<compile_context>
chip_gen: v6e
topology: v6e:2x2x1
jax: 0.10.0
libtpu: 0.0.40
codegen_flags: <defaults>
</compile_context>

<pallas_src>
import numpy as np
import jax
import jax.numpy as jnp
from jax import lax
from jax.experimental import pallas as pl
from jax.experimental.pallas import tpu as pltpu

C_FEAT = 512
HW = 7
S_FLAT = HW * HW            # 49
CONV_CH = 64
TAPS = 9
LAST_FC = 32
CLASS_NUM = 8
FLAT_DIM = C_FEAT * S_FLAT  # 25088
BN_EPS = 1e-5


# ---------------- constant spatial helper matrices ----------------

def make_shift_mats(H, W):
    """S[t] @ x_flat == zero-padded 3x3 tap (t = kh*3 + kw) of x (H*W, C)."""
    S = np.zeros((9, H * W, H * W), np.float32)
    for kh in range(3):
        for kw in range(3):
            t = kh * 3 + kw
            for h in range(H):
                for w in range(W):
                    hi, wi = h + kh - 1, w + kw - 1
                    if 0 <= hi < H and 0 <= wi < W:
                        S[t, h * W + w, hi * W + wi] = 1.0
    return S


def make_pool_mats(H, W):
    """max_a (P[a] @ x_flat) == MaxPool2d(kernel=2, stride=2) of x (H*W, C)."""
    Ho, Wo = H // 2, W // 2
    P = np.zeros((4, Ho * Wo, H * W), np.float32)
    for a in range(2):
        for b in range(2):
            s = a * 2 + b
            for i in range(Ho):
                for j in range(Wo):
                    P[s, i * Wo + j, (2 * i + a) * W + (2 * j + b)] = 1.0
    return P


# ---------------- per-sample conv1-half precompute (separable layer1) ----------------

def conv1_half_kernel(x_ref, ww_ref, s1_ref, a_ref):
    # x_ref: (1, 49, 512)   one sample (spatial-flat, channels-last)
    # ww_ref: (512, 576)    all 9 taps of one weight half stacked along N
    # s1_ref: (9, 49, 49)   constant shift matrices
    # a_ref: (1, 49, 64)    conv1-half output (no bias / BN — folded later)
    y = jnp.dot(x_ref[0], ww_ref[...], preferred_element_type=jnp.float32)   # (49, 576)
    acc = jnp.zeros((S_FLAT, CONV_CH), jnp.float32)
    for t in range(TAPS):
        acc = acc + jnp.dot(s1_ref[t], y[:, t * CONV_CH:(t + 1) * CONV_CH],
                            preferred_element_type=jnp.float32)
    a_ref[...] = acc[None]


def conv1_half(x_flat, w_wide, s1):
    B = x_flat.shape[0]
    grid_spec = pltpu.PrefetchScalarGridSpec(
        num_scalar_prefetch=0,
        grid=(B,),
        in_specs=[
            pl.BlockSpec((1, S_FLAT, C_FEAT), lambda b: (b, 0, 0)),
            pl.BlockSpec((C_FEAT, TAPS * CONV_CH), lambda b: (0, 0)),
            pl.BlockSpec((TAPS, S_FLAT, S_FLAT), lambda b: (0, 0, 0)),
        ],
        out_specs=pl.BlockSpec((1, S_FLAT, CONV_CH), lambda b: (b, 0, 0)),
    )
    return pl.pallas_call(
        conv1_half_kernel,
        out_shape=jax.ShapeDtypeStruct((B, S_FLAT, CONV_CH), jnp.float32),
        grid_spec=grid_spec,
        compiler_params=pltpu.CompilerParams(dimension_semantics=("parallel",)),
    )(x_flat, w_wide, s1)


# ---------------- pair-block kernel: one train sample x all Bq queries per step ----------------

def pair_block_kernel(aq_ref, at_ref, sc1_ref, sh1_ref, p1_ref, w2w_ref, s2_ref,
                      sc2_ref, sh2_ref, wf1_ref, bf1_ref, wf2_ref, bf2_ref, out_ref):
    Bq = aq_ref.shape[0]
    at = at_ref[0]                                                          # (49, 64)

    # layer1 tail: conv1_q(q) + conv1_t(t) -> BN (eval, folded) -> ReLU, for all Bq pairs
    y1 = jnp.maximum((aq_ref[...] + at[None]) * sc1_ref[...] + sh1_ref[...], 0.0)  # (Bq,49,64)

    # MaxPool2d(2): 7x7 -> 3x3 via one stacked selection matmul + VPU max over 4 groups
    p_list = []
    for b in range(Bq):
        t36 = jnp.dot(p1_ref[...], y1[b], preferred_element_type=jnp.float32)      # (36, 64)
        p_list.append(jnp.maximum(jnp.maximum(t36[0:9], t36[9:18]),
                                  jnp.maximum(t36[18:27], t36[27:36])))            # (9, 64)
    p_all = jnp.concatenate(p_list, axis=0)                                        # (Bq*9, 64)

    # layer2 conv weight matmul, batched over all pairs (wide N = 9*64)
    pw = jnp.dot(p_all, w2w_ref[...], preferred_element_type=jnp.float32)          # (Bq*9, 576)

    v_list = []
    for b in range(Bq):
        pw_b = pw[b * 9:(b + 1) * 9]                                               # (9, 576)
        acc2 = jnp.zeros((9, CONV_CH), jnp.float32)
        for t in range(TAPS):
            acc2 = acc2 + jnp.dot(s2_ref[t], pw_b[:, t * CONV_CH:(t + 1) * CONV_CH],
                                  preferred_element_type=jnp.float32)
        y2 = jnp.maximum(acc2 * sc2_ref[...] + sh2_ref[...], 0.0)                  # (9, 64)
        # MaxPool2d(2): 3x3 -> 1x1 == max over spatial positions {0,1,3,4}
        v_list.append(jnp.maximum(jnp.maximum(y2[0:1], y2[1:2]),
                                  jnp.maximum(y2[3:4], y2[4:5])))                  # (1, 64)
    v_all = jnp.concatenate(v_list, axis=0)                                        # (Bq, 64)

    # fc1 -> ReLU -> fc2 -> sigmoid, batched over the Bq pairs of this step
    h = jnp.maximum(jnp.dot(v_all, wf1_ref[...], preferred_element_type=jnp.float32)
                    + bf1_ref[...], 0.0)                                           # (Bq, 32)
    sig = jax.nn.sigmoid(jnp.dot(h, wf2_ref[...], preferred_element_type=jnp.float32)
                         + bf2_ref[...])                                           # (Bq, 1)

    # place pair j's scalar into lane j of one dense 128-lane output row
    lane = lax.broadcasted_iota(jnp.int32, (Bq, 128), 1)
    pair = lax.broadcasted_iota(jnp.int32, (Bq, 128), 0)
    row = jnp.sum(jnp.where(lane == pair, sig, 0.0), axis=0, keepdims=True)        # (1, 128)
    out_ref[...] = row[None]


def relation_network(xq_flat, xt_flat, rp):
    Bq = xq_flat.shape[0]
    Bt = xt_flat.shape[0]

    # per-sample conv1 halves (hoisted out of the pair loop)
    aq = conv1_half(xq_flat, rp['Wq_wide'], rp['S1'])      # (Bq, 49, 64)
    at = conv1_half(xt_flat, rp['Wt_wide'], rp['S1'])      # (Bt, 49, 64)

    def cspec(shape):
        nd = len(shape)
        return pl.BlockSpec(shape, lambda i, _nd=nd: (0,) * _nd)

    grid_spec = pltpu.PrefetchScalarGridSpec(
        num_scalar_prefetch=0,
        grid=(Bt,),
        in_specs=[
            cspec(aq.shape),                                          # all queries, resident
            pl.BlockSpec((1, S_FLAT, CONV_CH), lambda i: (i, 0, 0)),  # train sample i
            cspec(rp['sc1'].shape), cspec(rp['sh1'].shape),
            cspec(rp['P1'].shape),
            cspec(rp['W2_wide'].shape), cspec(rp['S2'].shape),
            cspec(rp['sc2'].shape), cspec(rp['sh2'].shape),
            cspec(rp['Wf1'].shape), cspec(rp['bf1'].shape),
            cspec(rp['Wf2'].shape), cspec(rp['bf2'].shape),
        ],
        out_specs=pl.BlockSpec((1, 1, 128), lambda i: (i, 0, 0)),
    )
    out = pl.pallas_call(
        pair_block_kernel,
        out_shape=jax.ShapeDtypeStruct((Bt, 1, 128), jnp.float32),
        grid_spec=grid_spec,
        compiler_params=pltpu.CompilerParams(dimension_semantics=("parallel",)),
    )(aq, at, rp['sc1'], rp['sh1'], rp['P1'], rp['W2_wide'], rp['S2'],
      rp['sc2'], rp['sh2'], rp['Wf1'], rp['bf1'], rp['Wf2'], rp['bf2'])
    # pair (train i, query j) -> out[i, 0, j]; original flattening is i*Bq + j
    return out[:, 0, :Bq].reshape(Bt * Bq, 1)


# ---------------- Classifier_2 kernel (25088 -> 32 -> 8) ----------------

def classifier2_kernel(x_ref, w1_ref, b1_ref, w2_ref, b2_ref, out_ref, acc_ref):
    k = pl.program_id(0)

    @pl.when(k == 0)
    def _init():
        acc_ref[...] = jnp.zeros_like(acc_ref)

    acc_ref[...] += jnp.dot(x_ref[...], w1_ref[...],
                            preferred_element_type=jnp.float32)

    @pl.when(k == pl.num_programs(0) - 1)
    def _finish():
        h = jnp.maximum(acc_ref[...] + b1_ref[...], 0.0)
        out_ref[...] = (jnp.dot(h, w2_ref[...], preferred_element_type=jnp.float32)
                        + b2_ref[...]).astype(out_ref.dtype)


def classifier_2(x_flat, params, tk=12544):
    Bt, K = x_flat.shape
    assert K % tk == 0
    grid_spec = pltpu.PrefetchScalarGridSpec(
        num_scalar_prefetch=0,
        grid=(K // tk,),
        in_specs=[
            pl.BlockSpec((Bt, tk), lambda k: (0, k)),
            pl.BlockSpec((tk, LAST_FC), lambda k: (k, 0)),
            pl.BlockSpec((1, LAST_FC), lambda k: (0, 0)),
            pl.BlockSpec((LAST_FC, CLASS_NUM), lambda k: (0, 0)),
            pl.BlockSpec((1, CLASS_NUM), lambda k: (0, 0)),
        ],
        out_specs=pl.BlockSpec((Bt, CLASS_NUM), lambda k: (0, 0)),
        scratch_shapes=[pltpu.VMEM((Bt, LAST_FC), jnp.float32)],
    )
    return pl.pallas_call(
        classifier2_kernel,
        out_shape=jax.ShapeDtypeStruct((Bt, CLASS_NUM), jnp.float32),
        grid_spec=grid_spec,
        compiler_params=pltpu.CompilerParams(
            dimension_semantics=("arbitrary",),
            vmem_limit_bytes=32 * 1024 * 1024),
    )(x_flat, params['Wc1'], params['bc1'].reshape(1, LAST_FC),
      params['Wc2'], params['bc2'].reshape(1, CLASS_NUM))


# ---------------- parameter setup / glue ----------------

def init_params(key):
    ks = jax.random.split(key, 12)
    p = {}
    p['W1'] = 0.02 * jax.random.normal(ks[0], (3, 3, 2 * C_FEAT, CONV_CH), jnp.float32)  # HWIO
    p['b1'] = 0.01 * jax.random.normal(ks[1], (CONV_CH,), jnp.float32)
    p['g1'] = 1.0 + 0.1 * jax.random.normal(ks[2], (CONV_CH,), jnp.float32)
    p['be1'] = 0.1 * jax.random.normal(ks[3], (CONV_CH,), jnp.float32)
    p['W2'] = 0.05 * jax.random.normal(ks[4], (3, 3, CONV_CH, CONV_CH), jnp.float32)
    p['b2'] = 0.01 * jax.random.normal(ks[5], (CONV_CH,), jnp.float32)
    p['g2'] = 1.0 + 0.1 * jax.random.normal(ks[6], (CONV_CH,), jnp.float32)
    p['be2'] = 0.1 * jax.random.normal(ks[7], (CONV_CH,), jnp.float32)
    p['Wf1'] = 0.1 * jax.random.normal(ks[8], (CONV_CH, LAST_FC), jnp.float32)
    p['bf1'] = 0.01 * jax.random.normal(ks[9], (LAST_FC,), jnp.float32)
    p['Wf2'] = 0.1 * jax.random.normal(ks[10], (LAST_FC, 1), jnp.float32)
    p['bf2'] = jnp.zeros((1,), jnp.float32)
    kc = jax.random.split(ks[11], 4)
    p['Wc1'] = 0.01 * jax.random.normal(kc[0], (FLAT_DIM, LAST_FC), jnp.float32)
    p['bc1'] = 0.01 * jax.random.normal(kc[1], (LAST_FC,), jnp.float32)
    p['Wc2'] = 0.1 * jax.random.normal(kc[2], (LAST_FC, CLASS_NUM), jnp.float32)
    p['bc2'] = 0.01 * jax.random.normal(kc[3], (CLASS_NUM,), jnp.float32)
    return p


def prep_relation_params(p):
    inv1 = p['g1'] / jnp.sqrt(1.0 + BN_EPS)     # eval BN: running_var = 1
    inv2 = p['g2'] / jnp.sqrt(1.0 + BN_EPS)
    wq_taps = p['W1'][:, :, :C_FEAT, :].reshape(TAPS, C_FEAT, CONV_CH)
    wt_taps = p['W1'][:, :, C_FEAT:, :].reshape(TAPS, C_FEAT, CONV_CH)
    w2_taps = p['W2'].reshape(TAPS, CONV_CH, CONV_CH)
    return {
        'S1': jnp.asarray(make_shift_mats(HW, HW)),                                  # (9, 49, 49)
        'Wq_wide': jnp.transpose(wq_taps, (1, 0, 2)).reshape(C_FEAT, TAPS * CONV_CH),
        'Wt_wide': jnp.transpose(wt_taps, (1, 0, 2)).reshape(C_FEAT, TAPS * CONV_CH),
        'sc1': inv1.reshape(1, CONV_CH),
        'sh1': (p['b1'] * inv1 + p['be1']).reshape(1, CONV_CH),                      # running_mean = 0
        'P1': jnp.asarray(make_pool_mats(HW, HW)).reshape(4 * 9, S_FLAT),            # (36, 49)
        'S2': jnp.asarray(make_shift_mats(3, 3)),                                    # (9, 9, 9)
        'W2_wide': jnp.transpose(w2_taps, (1, 0, 2)).reshape(CONV_CH, TAPS * CONV_CH),
        'sc2': inv2.reshape(1, CONV_CH),
        'sh2': (p['b2'] * inv2 + p['be2']).reshape(1, CONV_CH),
        'Wf1': p['Wf1'],
        'bf1': p['bf1'].reshape(1, LAST_FC),
        'Wf2': p['Wf2'],
        'bf2': p['bf2'].reshape(1, 1),
    }


def new_net_forward(query_nchw, train_nchw, params):
    rp = prep_relation_params(params)
    xq_flat = jnp.transpose(query_nchw, (0, 2, 3, 1)).reshape(
        query_nchw.shape[0], S_FLAT, C_FEAT)
    xt_flat = jnp.transpose(train_nchw, (0, 2, 3, 1)).reshape(
        train_nchw.shape[0], S_FLAT, C_FEAT)
    x_1 = relation_network(xq_flat, xt_flat, rp)                  # (Bt*Bq, 1)
    x_train_vec = train_nchw.reshape(train_nchw.shape[0], -1)     # NCHW flatten, 25088
    x_2 = classifier_2(x_train_vec, params)                       # (Bt, 8)
    return x_1, x_2


# ---------------- pure-JAX reference (mirrors the PyTorch forward) ----------------

def reference_forward(q_nchw, t_nchw, p):
    Bq, Bt = q_nchw.shape[0], t_nchw.shape[0]
    HI = lax.Precision.HIGHEST
    sq = jnp.broadcast_to(q_nchw[None], (Bt,) + q_nchw.shape)
    st = jnp.broadcast_to(t_nchw[:, None], (Bt, Bq) + t_nchw.shape[1:])
    x = jnp.concatenate([sq, st], axis=2).reshape(Bt * Bq, 2 * C_FEAT, HW, HW)

    def block(z, W_hwio, b, g, be):
        W_oihw = jnp.transpose(W_hwio, (3, 2, 0, 1))
        z = lax.conv_general_dilated(z, W_oihw, (1, 1), [(1, 1), (1, 1)],
                                     dimension_numbers=('NCHW', 'OIHW', 'NCHW'),
                                     precision=HI)
        z = z + b[None, :, None, None]
        z = (z - 0.0) / jnp.sqrt(1.0 + BN_EPS) * g[None, :, None, None] + be[None, :, None, None]
        z = jnp.maximum(z, 0.0)
        return lax.reduce_window(z, -jnp.inf, lax.max, (1, 1, 2, 2), (1, 1, 2, 2), 'VALID')

    z = block(x, p['W1'], p['b1'], p['g1'], p['be1'])
    z = block(z, p['W2'], p['b2'], p['g2'], p['be2'])
    z = z.reshape(z.shape[0], -1)                                      # (N, 64)
    h = jnp.maximum(jnp.dot(z, p['Wf1'], precision=HI) + p['bf1'], 0.0)
    x1 = jax.nn.sigmoid(jnp.dot(h, p['Wf2'], precision=HI) + p['bf2'])

    xt = t_nchw.reshape(Bt, -1)
    h2 = jnp.maximum(jnp.dot(xt, p['Wc1'], precision=HI) + p['bc1'], 0.0)
    x2 = jnp.dot(h2, p['Wc2'], precision=HI) + p['bc2']
    return x1, x2


if __name__ == "__main__":
    key = jax.random.PRNGKey(0)
    kq, kt, kp = jax.random.split(key, 3)
    Bq, Bt = 2, 3
    # Inputs are the backbone feature maps (see TODO(synk) above): NCHW (B, 512, 7, 7).
    query_feats = jax.random.normal(kq, (Bq, C_FEAT, HW, HW), jnp.float32)
    train_feats = jax.random.normal(kt, (Bt, C_FEAT, HW, HW), jnp.float32)
    params = init_params(kp)

    x1, x2 = new_net_forward(query_feats, train_feats, params)
    jax.block_until_ready((x1, x2))

    assert x1.shape == (Bt * Bq, 1) and x2.shape == (Bt, CLASS_NUM)
    x1_ref, x2_ref = reference_forward(query_feats, train_feats, params)
    np.testing.assert_allclose(np.asarray(x1), np.asarray(x1_ref), rtol=5e-3, atol=5e-3)
    np.testing.assert_allclose(np.asarray(x2), np.asarray(x2_ref), rtol=5e-3, atol=5e-3)
    print("KERNEL_OK")
</pallas_src>

<mosaic_0001>
module attributes {stable_mosaic.version = 11 : i64} {
  func.func @conv1_half_kernel(%arg0: i32, %arg1: memref<1x49x512xf32, #tpu.memory_space<vmem>>, %arg2: memref<512x576xf32, #tpu.memory_space<vmem>>, %arg3: memref<9x49x49xf32, #tpu.memory_space<vmem>>, %arg4: memref<1x49x64xf32, #tpu.memory_space<vmem>>) attributes {dimension_semantics = [#tpu.dimension_semantics<parallel>], iteration_bounds = array<i64: 2>, scalar_prefetch = 0 : i64, scratch_operands = 0 : i64, tpu.core_type = #tpu.core_type<tc>, window_params = [{transform_indices = @transform_0, window_bounds = array<i64: 1, 49, 512>}, {pipeline_mode = #tpu.pipeline_mode<synchronous>, transform_indices = @transform_1, window_bounds = array<i64: 512, 576>}, {pipeline_mode = #tpu.pipeline_mode<synchronous>, transform_indices = @transform_2, window_bounds = array<i64: 9, 49, 49>}, {transform_indices = @transform_3, window_bounds = array<i64: 1, 49, 64>}]} {
    %c0 = arith.constant 0 : index
    %c0_0 = arith.constant 0 : index
    %c0_1 = arith.constant 0 : index
    %0 = vector.load %arg1[%c0, %c0_0, %c0_1] : memref<1x49x512xf32, #tpu.memory_space<vmem>>, vector<1x49x512xf32>
    %1 = vector.shape_cast %0 : vector<1x49x512xf32> to vector<49x512xf32>
    %c0_2 = arith.constant 0 : index
    %c0_3 = arith.constant 0 : index
    %2 = vector.load %arg2[%c0_2, %c0_3] : memref<512x576xf32, #tpu.memory_space<vmem>>, vector<512x576xf32>
    %cst = arith.constant dense<0.000000e+00> : vector<49x576xf32>
    %3 = tpu.matmul %1, %2, %cst {dimension_numbers = #tpu.dot_dimension_numbers<[1], [0], [0], [1], [0, 0, 1, 1], [], []>} : vector<49x512xf32>, vector<512x576xf32>, vector<49x576xf32> -> vector<49x576xf32>
    %cst_4 = arith.constant 0.000000e+00 : f32
    %4 = vector.broadcast %cst_4 : f32 to vector<49x64xf32>
    %c0_5 = arith.constant 0 : index
    %c0_6 = arith.constant 0 : index
    %c0_7 = arith.constant 0 : index
    %5 = vector.load %arg3[%c0_5, %c0_6, %c0_7] : memref<9x49x49xf32, #tpu.memory_space<vmem>>, vector<1x49x49xf32>
    %6 = vector.shape_cast %5 : vector<1x49x49xf32> to vector<49x49xf32>
    %7 = vector.extract_strided_slice %3 {offsets = [0, 0], sizes = [49, 64], strides = [1, 1]} : vector<49x576xf32> to vector<49x64xf32>
    %cst_8 = arith.constant dense<0.000000e+00> : vector<49x64xf32>
    %8 = tpu.matmul %6, %7, %cst_8 {dimension_numbers = #tpu.dot_dimension_numbers<[1], [0], [0], [1], [0, 0, 1, 1], [], []>} : vector<49x49xf32>, vector<49x64xf32>, vector<49x64xf32> -> vector<49x64xf32>
    %9 = arith.addf %4, %8 : vector<49x64xf32>
    %c1 = arith.constant 1 : index
    %c0_9 = arith.constant 0 : index
    %c0_10 = arith.constant 0 : index
    %10 = vector.load %arg3[%c1, %c0_9, %c0_10] : memref<9x49x49xf32, #tpu.memory_space<vmem>>, vector<1x49x49xf32>
    %11 = vector.shape_cast %10 : vector<1x49x49xf32> to vector<49x49xf32>
    %12 = vector.extract_strided_slice %3 {offsets = [0, 64], sizes = [49, 64], strides = [1, 1]} : vector<49x576xf32> to vector<49x64xf32>
    %cst_11 = arith.constant dense<0.000000e+00> : vector<49x64xf32>
    %13 = tpu.matmul %11, %12, %cst_11 {dimension_numbers = #tpu.dot_dimension_numbers<[1], [0], [0], [1], [0, 0, 1, 1], [], []>} : vector<49x49xf32>, vector<49x64xf32>, vector<49x64xf32> -> vector<49x64xf32>
    %14 = arith.addf %9, %13 : vector<49x64xf32>
    %c2 = arith.constant 2 : index
    %c0_12 = arith.constant 0 : index
    %c0_13 = arith.constant 0 : index
    %15 = vector.load %arg3[%c2, %c0_12, %c0_13] : memref<9x49x49xf32, #tpu.memory_space<vmem>>, vector<1x49x49xf32>
    %16 = vector.shape_cast %15 : vector<1x49x49xf32> to vector<49x49xf32>
    %17 = vector.extract_strided_slice %3 {offsets = [0, 128], sizes = [49, 64], strides = [1, 1]} : vector<49x576xf32> to vector<49x64xf32>
    %cst_14 = arith.constant dense<0.000000e+00> : vector<49x64xf32>
    %18 = tpu.matmul %16, %17, %cst_14 {dimension_numbers = #tpu.dot_dimension_numbers<[1], [0], [0], [1], [0, 0, 1, 1], [], []>} : vector<49x49xf32>, vector<49x64xf32>, vector<49x64xf32> -> vector<49x64xf32>
    %19 = arith.addf %14, %18 : vector<49x64xf32>
    %c3 = arith.constant 3 : index
    %c0_15 = arith.constant 0 : index
    %c0_16 = arith.constant 0 : index
    %20 = vector.load %arg3[%c3, %c0_15, %c0_16] : memref<9x49x49xf32, #tpu.memory_space<vmem>>, vector<1x49x49xf32>
    %21 = vector.shape_cast %20 : vector<1x49x49xf32> to vector<49x49xf32>
    %22 = vector.extract_strided_slice %3 {offsets = [0, 192], sizes = [49, 64], strides = [1, 1]} : vector<49x576xf32> to vector<49x64xf32>
    %cst_17 = arith.constant dense<0.000000e+00> : vector<49x64xf32>
    %23 = tpu.matmul %21, %22, %cst_17 {dimension_numbers = #tpu.dot_dimension_numbers<[1], [0], [0], [1], [0, 0, 1, 1], [], []>} : vector<49x49xf32>, vector<49x64xf32>, vector<49x64xf32> -> vector<49x64xf32>
    %24 = arith.addf %19, %23 : vector<49x64xf32>
    %c4 = arith.constant 4 : index
    %c0_18 = arith.constant 0 : index
    %c0_19 = arith.constant 0 : index
    %25 = vector.load %arg3[%c4, %c0_18, %c0_19] : memref<9x49x49xf32, #tpu.memory_space<vmem>>, vector<1x49x49xf32>
    %26 = vector.shape_cast %25 : vector<1x49x49xf32> to vector<49x49xf32>
    %27 = vector.extract_strided_slice %3 {offsets = [0, 256], sizes = [49, 64], strides = [1, 1]} : vector<49x576xf32> to vector<49x64xf32>
    %cst_20 = arith.constant dense<0.000000e+00> : vector<49x64xf32>
    %28 = tpu.matmul %26, %27, %cst_20 {dimension_numbers = #tpu.dot_dimension_numbers<[1], [0], [0], [1], [0, 0, 1, 1], [], []>} : vector<49x49xf32>, vector<49x64xf32>, vector<49x64xf32> -> vector<49x64xf32>
    %29 = arith.addf %24, %28 : vector<49x64xf32>
    %c5 = arith.constant 5 : index
    %c0_21 = arith.constant 0 : index
    %c0_22 = arith.constant 0 : index
    %30 = vector.load %arg3[%c5, %c0_21, %c0_22] : memref<9x49x49xf32, #tpu.memory_space<vmem>>, vector<1x49x49xf32>
    %31 = vector.shape_cast %30 : vector<1x49x49xf32> to vector<49x49xf32>
    %32 = vector.extract_strided_slice %3 {offsets = [0, 320], sizes = [49, 64], strides = [1, 1]} : vector<49x576xf32> to vector<49x64xf32>
    %cst_23 = arith.constant dense<0.000000e+00> : vector<49x64xf32>
    %33 = tpu.matmul %31, %32, %cst_23 {dimension_numbers = #tpu.dot_dimension_numbers<[1], [0], [0], [1], [0, 0, 1, 1], [], []>} : vector<49x49xf32>, vector<49x64xf32>, vector<49x64xf32> -> vector<49x64xf32>
    %34 = arith.addf %29, %33 : vector<49x64xf32>
    %c6 = arith.constant 6 : index
    %c0_24 = arith.constant 0 : index
    %c0_25 = arith.constant 0 : index
    %35 = vector.load %arg3[%c6, %c0_24, %c0_25] : memref<9x49x49xf32, #tpu.memory_space<vmem>>, vector<1x49x49xf32>
    %36 = vector.shape_cast %35 : vector<1x49x49xf32> to vector<49x49xf32>
    %37 = vector.extract_strided_slice %3 {offsets = [0, 384], sizes = [49, 64], strides = [1, 1]} : vector<49x576xf32> to vector<49x64xf32>
    %cst_26 = arith.constant dense<0.000000e+00> : vector<49x64xf32>
    %38 = tpu.matmul %36, %37, %cst_26 {dimension_numbers = #tpu.dot_dimension_numbers<[1], [0], [0], [1], [0, 0, 1, 1], [], []>} : vector<49x49xf32>, vector<49x64xf32>, vector<49x64xf32> -> vector<49x64xf32>
    %39 = arith.addf %34, %38 : vector<49x64xf32>
    %c7 = arith.constant 7 : index
    %c0_27 = arith.constant 0 : index
    %c0_28 = arith.constant 0 : index
    %40 = vector.load %arg3[%c7, %c0_27, %c0_28] : memref<9x49x49xf32, #tpu.memory_space<vmem>>, vector<1x49x49xf32>
    %41 = vector.shape_cast %40 : vector<1x49x49xf32> to vector<49x49xf32>
    %42 = vector.extract_strided_slice %3 {offsets = [0, 448], sizes = [49, 64], strides = [1, 1]} : vector<49x576xf32> to vector<49x64xf32>
    %cst_29 = arith.constant dense<0.000000e+00> : vector<49x64xf32>
    %43 = tpu.matmul %41, %42, %cst_29 {dimension_numbers = #tpu.dot_dimension_numbers<[1], [0], [0], [1], [0, 0, 1, 1], [], []>} : vector<49x49xf32>, vector<49x64xf32>, vector<49x64xf32> -> vector<49x64xf32>
    %44 = arith.addf %39, %43 : vector<49x64xf32>
    %c8 = arith.constant 8 : index
    %c0_30 = arith.constant 0 : index
    %c0_31 = arith.constant 0 : index
    %45 = vector.load %arg3[%c8, %c0_30, %c0_31] : memref<9x49x49xf32, #tpu.memory_space<vmem>>, vector<1x49x49xf32>
    %46 = vector.shape_cast %45 : vector<1x49x49xf32> to vector<49x49xf32>
    %47 = vector.extract_strided_slice %3 {offsets = [0, 512], sizes = [49, 64], strides = [1, 1]} : vector<49x576xf32> to vector<49x64xf32>
    %cst_32 = arith.constant dense<0.000000e+00> : vector<49x64xf32>
    %48 = tpu.matmul %46, %47, %cst_32 {dimension_numbers = #tpu.dot_dimension_numbers<[1], [0], [0], [1], [0, 0, 1, 1], [], []>} : vector<49x49xf32>, vector<49x64xf32>, vector<49x64xf32> -> vector<49x64xf32>
    %49 = arith.addf %44, %48 : vector<49x64xf32>
    %50 = vector.shape_cast %49 : vector<49x64xf32> to vector<1x49x64xf32>
    %c0_33 = arith.constant 0 : index
    %c0_34 = arith.constant 0 : index
    %c0_35 = arith.constant 0 : index
    %51 = vector.load %arg4[%c0_33, %c0_34, %c0_35] : memref<1x49x64xf32, #tpu.memory_space<vmem>>, vector<1x49x64xf32>
    tpu.vector_store %arg4[%c0_33, %c0_34, %c0_35], %50 {strides = array<i32>} : memref<1x49x64xf32, #tpu.memory_space<vmem>>, vector<1x49x64xf32>,
    return
  }
  func.func @transform_0(%arg0: i32) -> (i32, i32, i32) {
    %c0_i32 = arith.constant 0 : i32
    %c0_i32_0 = arith.constant 0 : i32
    %c0_i32_1 = arith.constant 0 : i32
    return %arg0, %c0_i32, %c0_i32_0 : i32, i32, i32
  }
  func.func @transform_1(%arg0: i32) -> (i32, i32) {
    %c0_i32 = arith.constant 0 : i32
    %c0_i32_0 = arith.constant 0 : i32
    %c0_i32_1 = arith.constant 0 : i32
    return %c0_i32, %c0_i32_0 : i32, i32
  }
  func.func @transform_2(%arg0: i32) -> (i32, i32, i32) {
    %c0_i32 = arith.constant 0 : i32
    %c0_i32_0 = arith.constant 0 : i32
    %c0_i32_1 = arith.constant 0 : i32
    %c0_i32_2 = arith.constant 0 : i32
    return %c0_i32, %c0_i32_0, %c0_i32_1 : i32, i32, i32
  }
  func.func @transform_3(%arg0: i32) -> (i32, i32, i32) {
    %c0_i32 = arith.constant 0 : i32
    %c0_i32_0 = arith.constant 0 : i32
    %c0_i32_1 = arith.constant 0 : i32
    return %arg0, %c0_i32, %c0_i32_0 : i32, i32, i32
  }
}

</mosaic_0001>

<llo_original>
// kernel: tpu_custom_call.1
$region0: #{tpu_custom_call.1}
  #allocation0 [shape = 'u32[]', space=smem, size = 0x4, offset = 0x4, fixed_abs, tag = 'smem constant byte address 0x4 - core index']
  #allocation1 [shape = 'u32[144,128]{1,0:T(1,128)}', space=vmem, size = 0x12000, scoped, tag = 'internal scratch']
  %s0 = inlined_call_operand.vmem [shape: f32[2,49,512], index: 0, kind: input, shape index: {}]
  %s1 = inlined_call_operand.vmem [shape: f32[512,576], index: 1, kind: input, shape index: {}]
  %s2 = inlined_call_operand.vmem [shape: f32[9,49,49], index: 2, kind: input, shape index: {}]
  %s3 = inlined_call_operand.vmem [shape: f32[2,49,64], index: 3, kind: output, shape index: {}]
  %s4 = sld [smem:[#allocation0]]
  $region45: #{tpu_custom_call.1} parent=0
    _
  %s6 = ssub.s32 1, %s4
  %s7 = scalar_select 0, %s6, %s4
  loop: start=0, step=1, limit=4
  $region2: #{tpu_custom_call.1} parent=0 // loop_pre_header
    _
  $region3: #{tpu_custom_call.1} parent=0 // loop_header
    %s9 = sphi 0, %s13
    %p10 = scmp.ge.s32.totalorder %s9, 4
    %s19 = sphi 0, %s21
    %s22 = sphi 0, %s19
    %s23 = sphi 0, %s22
    %s39 = sphi 0, %s23
    %s43 = sphi 0, %s43
    %s45 = sphi 0, %s43
    %s46 = sphi 0, %s45
    %s60 = sphi 0, %s46
    %s64 = sphi 0, %s64
    %s66 = sphi 0, %s64
    %s67 = sphi 0, %s66
    %s81 = sphi 0, %s67
    %s87 = sphi 0, %s89
    %s90 = sphi 0, %s87
    %s91 = sphi 0, %s90
    %s107 = sphi 0, %s91
  $region4: #{tpu_custom_call.1} parent=0 // loop_header_branch
    %12 = sbr.rel (%p10) target = $region8
  $region5: #{tpu_custom_call.1} parent=0 // loop_body
    %s14 = ssub.s32 %s9, 1
    %s15 = ssub.s32 %s9, 2
    %s16 = sadd.s32 %s9, 1
    %s17 = ssub.s32 %s9, %s16
    %p18 = scmp.eq.s32.totalorder %s17, 0
    %s20 = sadd.s32 %s19, 1
    %s21 = scalar_select %p18, %s19, %s20
    %p24 = pneg %p18
    %p25 = scmp.eq.s32.totalorder %s9, 1
    %p26 = por %p24, %p25
    %p27 = scmp.ne.s32.totalorder %s19, %s22
    %p28 = scmp.eq.s32.totalorder %s9, 0
    %p29 = por %p27, %p28
    %p30 = scmp.ne.s32.totalorder %s19, %s22
    %p31 = scmp.eq.s32.totalorder %s14, 1
    %p32 = por %p30, %p31
    %p33 = scmp.ne.s32.totalorder %s22, %s23
    %p34 = scmp.eq.s32.totalorder %s14, 0
    %p35 = por %p33, %p34
    %p36 = scmp.ne.s32.totalorder %s22, %s23
    %p37 = scmp.eq.s32.totalorder %s15, 1
    %p38 = por %p36, %p37
    %p40 = scmp.ne.s32.totalorder %s23, %s39
    %p41 = scmp.eq.s32.totalorder %s15, 0
    %p42 = por %p40, %p41
    %s44 = sadd.s32 %s43, 1
    %p47 = scmp.eq.s32.totalorder %s9, 1
    %p48 = scmp.ne.s32.totalorder %s43, %s45
    %p49 = scmp.eq.s32.totalorder %s9, 0
    %p50 = por %p48, %p49
    %p51 = scmp.ne.s32.totalorder %s43, %s45
    %p52 = scmp.eq.s32.totalorder %s14, 1
    %p53 = por %p51, %p52
    %p54 = scmp.ne.s32.totalorder %s45, %s46
    %p55 = scmp.eq.s32.totalorder %s14, 0
    %p56 = por %p54, %p55
    %p57 = scmp.ne.s32.totalorder %s45, %s46
    %p58 = scmp.eq.s32.totalorder %s15, 1
    %p59 = por %p57, %p58
    %p61 = scmp.ne.s32.totalorder %s46, %s60
    %p62 = scmp.eq.s32.totalorder %s15, 0
    %p63 = por %p61, %p62
    %s65 = sadd.s32 %s64, 1
    %p68 = scmp.eq.s32.totalorder %s9, 1
    %p69 = scmp.ne.s32.totalorder %s64, %s66
    %p70 = scmp.eq.s32.totalorder %s9, 0
    %p71 = por %p69, %p70
    %p72 = scmp.ne.s32.totalorder %s64, %s66
    %p73 = scmp.eq.s32.totalorder %s14, 1
    %p74 = por %p72, %p73
    %p75 = scmp.ne.s32.totalorder %s66, %s67
    %p76 = scmp.eq.s32.totalorder %s14, 0
    %p77 = por %p75, %p76
    %p78 = scmp.ne.s32.totalorder %s66, %s67
    %p79 = scmp.eq.s32.totalorder %s15, 1
    %p80 = por %p78, %p79
    %p82 = scmp.ne.s32.totalorder %s67, %s81
    %p83 = scmp.eq.s32.totalorder %s15, 0
    %p84 = por %p82, %p83
    %s85 = ssub.s32 %s9, %s16
    %p86 = scmp.eq.s32.totalorder %s85, 0
    %s88 = sadd.s32 %s87, 1
    %s89 = scalar_select %p86, %s87, %s88
    %p92 = pneg %p86
    %p93 = scmp.eq.s32.totalorder %s9, 1
    %p94 = por %p92, %p93
    %p95 = scmp.ne.s32.totalorder %s87, %s90
    %p96 = scmp.eq.s32.totalorder %s9, 0
    %p97 = por %p95, %p96
    %p98 = scmp.ne.s32.totalorder %s87, %s90
    %p99 = scmp.eq.s32.totalorder %s14, 1
    %p100 = por %p98, %p99
    %p101 = scmp.ne.s32.totalorder %s90, %s91
    %p102 = scmp.eq.s32.totalorder %s14, 0
    %p103 = por %p101, %p102
    %p104 = scmp.ne.s32.totalorder %s90, %s91
    %p105 = scmp.eq.s32.totalorder %s15, 1
    %p106 = por %p104, %p105
    %p108 = scmp.ne.s32.totalorder %s91, %s107
    %p109 = scmp.eq.s32.totalorder %s15, 0
    %p110 = por %p108, %p109
    %p111 = scmp.le.s32.totalorder 1, %s9
    %p112 = scmp.lt.s32.totalorder %s9, 3
    %p113 = pnand %p111, %p112
    %p114 = pneg %p113
    // Predicated region
    $region9: #{tpu_custom_call.1} parent=5 // pred_check
      _
    $region10: #{tpu_custom_call.1} parent=5 // pred_check_branch
      %116 = sbr.rel (%p113) target = $region12
    $region11: #{tpu_custom_call.1} parent=5 // pred_region
      %s117 = ssub.s32 %s9, 1
      // Predicated region
      $region13: #{tpu_custom_call.1} parent=11 // pred_check
        %p118 = pneg %p56
      $region14: #{tpu_custom_call.1} parent=11 // pred_check_branch
        %120 = sbr.rel (%p118) target = $region16
      $region15: #{tpu_custom_call.1} parent=11 // pred_region
        _
      $region16: #{tpu_custom_call.1} parent=11 // pred_fallthru
        _
      // Predicated region
      $region17: #{tpu_custom_call.1} parent=11 // pred_check
        %p121 = pneg %p77
      $region18: #{tpu_custom_call.1} parent=11 // pred_check_branch
        %123 = sbr.rel (%p121) target = $region20
      $region19: #{tpu_custom_call.1} parent=11 // pred_region
        _
      $region20: #{tpu_custom_call.1} parent=11 // pred_fallthru
        _
    $region12: #{tpu_custom_call.1} parent=5 // pred_fallthru
      _
    %p124 = scmp.lt.s32.totalorder %s9, 2
    // Predicated region
    $region21: #{tpu_custom_call.1} parent=5 // pred_check
      %p125 = pneg %p124
    $region22: #{tpu_custom_call.1} parent=5 // pred_check_branch
      %127 = sbr.rel (%p125) target = $region24
    $region23: #{tpu_custom_call.1} parent=5 // pred_region
      // Predicated region
      $region25: #{tpu_custom_call.1} parent=23 // pred_check
        %p128 = pneg %p29
      $region26: #{tpu_custom_call.1} parent=23 // pred_check_branch
        %130 = sbr.rel (%p128) target = $region28
      $region27: #{tpu_custom_call.1} parent=23 // pred_region
        %p131 = scmp.lt.s32.totalorder %s9, 1
        %s132 = scalar_select %p131, %s9, 1
        %s133 = smul.addr %s132, 28
        %s134 = smul.addr %s133, 8
        %s135 = scalar_lea.vmem %s0, %s134
      $region28: #{tpu_custom_call.1} parent=23 // pred_fallthru
        _
    $region24: #{tpu_custom_call.1} parent=5 // pred_fallthru
      _
    %p136 = scmp.le.s32.totalorder 1, %s9
    %p137 = scmp.lt.s32.totalorder %s9, 3
    %p138 = pnand %p136, %p137
    %p139 = pneg %p138
    // Predicated region
    $region29: #{tpu_custom_call.1} parent=5 // pred_check
      _
    $region30: #{tpu_custom_call.1} parent=5 // pred_check_branch
      %141 = sbr.rel (%p138) target = $region32
    $region31: #{tpu_custom_call.1} parent=5 // pred_region
      %s142 = ssub.s32 %s9, 1
      %p143 = scmp.lt.s32.totalorder %s14, 1
      %s144 = scalar_select %p143, %s14, 1
      %s145 = smul.addr %s144, 28
      %s146 = smul.addr %s145, 8
      %s147 = scalar_lea.vmem %s0, %s146
      %p148 = pneg %p35
      %p149 = pneg %p32
      %p150 = pneg %p56
      %p151 = pneg %p53
      %p152 = pneg %p77
      %p153 = pneg %p74
      %p154 = pneg %p103
      %p155 = pneg %p100
      %p156 = scmp.lt.s32.totalorder %s14, 1
      %s157 = scalar_select %p156, %s14, 1
      %s158 = smul.addr %s157, 7
      %s159 = smul.addr %s158, 8
      %s160 = scalar_lea.vmem %s3, %s159
      %p161 = scmp.lt.s32.totalorder %s14, 1
      %s162 = scalar_select %p161, %s14, 1
      %s163 = smul.addr %s162, 28
      %s164 = smul.addr %s163, 8
      %s165 = scalar_lea.vmem %s0, %s164
      %p166 = scmp.lt.s32.totalorder %s14, 1
      %s167 = scalar_select %p166, %s14, 1
      %s168 = smul.addr %s167, 7
      %s169 = smul.addr %s168, 8
      %s170 = scalar_lea.vmem %s3, %s169
      %v171 = vld [vmem:[%s165] sm:$0xff]
      %v172 = vld [vmem:[%s165 + $0x8] sm:$0xff]
      %v173 = vld [vmem:[%s165 + $0x10] sm:$0xff]
      %v174 = vld [vmem:[%s165 + $0x18] sm:$0xff]
      %v175 = vld [vmem:[%s165 + $0x20] sm:$0xff]
      %v176 = vld [vmem:[%s165 + $0x28] sm:$0xff]
      %v177 = vld [vmem:[%s165 + $0x30] sm:$0xff]
      %v178 = vld [vmem:[%s165 + $0x38] sm:$0xff]
      %v179 = vld [vmem:[%s165 + $0x40] sm:$0xff]
      %v180 = vld [vmem:[%s165 + $0x48] sm:$0xff]
      %v181 = vld [vmem:[%s165 + $0x50] sm:$0xff]
      %v182 = vld [vmem:[%s165 + $0x58] sm:$0xff]
      %v183 = vld [vmem:[%s165 + $0x60] sm:$0xff]
      %v184 = vld [vmem:[%s165 + $0x68] sm:$0xff]
      %v185 = vld [vmem:[%s165 + $0x70] sm:$0xff]
      %v186 = vld [vmem:[%s165 + $0x78] sm:$0xff]
      %v187 = vld [vmem:[%s165 + $0x80] sm:$0xff]
      %v188 = vld [vmem:[%s165 + $0x88] sm:$0xff]
      %v189 = vld [vmem:[%s165 + $0x90] sm:$0xff]
      %v190 = vld [vmem:[%s165 + $0x98] sm:$0xff]
      %v191 = vld [vmem:[%s165 + $0xa0] sm:$0xff]
      %v192 = vld [vmem:[%s165 + $0xa8] sm:$0xff]
      %v193 = vld [vmem:[%s165 + $0xb0] sm:$0xff]
      %v194 = vld [vmem:[%s165 + $0xb8] sm:$0xff]
      %v195 = vld [vmem:[%s165 + $0xc0] sm:$0x1]
      %v196 = vld [vmem:[%s165 + $0xc8] sm:$0x1]
      %v197 = vld [vmem:[%s165 + $0xd0] sm:$0x1]
      %v198 = vld [vmem:[%s165 + $0xd8] sm:$0x1]
      %v199 = vld [vmem:[%s1] sm:$0xff]
      %v200 = vld [vmem:[%s1 + $0x8] sm:$0xff]
      %v201 = vld [vmem:[%s1 + $0x10] sm:$0xff]
      %v202 = vld [vmem:[%s1 + $0x18] sm:$0xff]
      %v203 = vld [vmem:[%s1 + $0x20] sm:$0xff]
      %v204 = vld [vmem:[%s1 + $0x28] sm:$0xff]
      %v205 = vld [vmem:[%s1 + $0x30] sm:$0xff]
      %v206 = vld [vmem:[%s1 + $0x38] sm:$0xff]
      %v207 = vld [vmem:[%s1 + $0x40] sm:$0xff]
      %v208 = vld [vmem:[%s1 + $0x48] sm:$0xff]
      %v209 = vld [vmem:[%s1 + $0x50] sm:$0xff]
      %v210 = vld [vmem:[%s1 + $0x58] sm:$0xff]
      %v211 = vld [vmem:[%s1 + $0x60] sm:$0xff]
      %v212 = vld [vmem:[%s1 + $0x68] sm:$0xff]
      %v213 = vld [vmem:[%s1 + $0x70] sm:$0xff]
      %v214 = vld [vmem:[%s1 + $0x78] sm:$0xff]
      %v215 = vld [vmem:[%s1 + $0x80] sm:$0xff]
      %v216 = vld [vmem:[%s1 + $0x88] sm:$0xff]
      %v217 = vld [vmem:[%s1 + $0x90] sm:$0xff]
      %v218 = vld [vmem:[%s1 + $0x98] sm:$0xff]
      %v219 = vld [vmem:[%s1 + $0xa0] sm:$0xff]
      %v220 = vld [vmem:[%s1 + $0xa8] sm:$0xff]
      %v221 = vld [vmem:[%s1 + $0xb0] sm:$0xff]
      %v222 = vld [vmem:[%s1 + $0xb8] sm:$0xff]
      %v223 = vld [vmem:[%s1 + $0xc0] sm:$0xff]
      %v224 = vld [vmem:[%s1 + $0xc8] sm:$0xff]
      %v225 = vld [vmem:[%s1 + $0xd0] sm:$0xff]
      %v226 = vld [vmem:[%s1 + $0xd8] sm:$0xff]
      %v227 = vld [vmem:[%s1 + $0xe0] sm:$0xff]
      %v228 = vld [vmem:[%s1 + $0xe8] sm:$0xff]
      %v229 = vld [vmem:[%s1 + $0xf0] sm:$0xff]
      %v230 = vld [vmem:[%s1 + $0xf8] sm:$0xff]
      %v231 = vld [vmem:[%s1 + $0x100] sm:$0xff]
      %v232 = vld [vmem:[%s1 + $0x108] sm:$0xff]
      %v233 = vld [vmem:[%s1 + $0x110] sm:$0xff]
      %v234 = vld [vmem:[%s1 + $0x118] sm:$0xff]
      %v235 = vld [vmem:[%s1 + $0x120] sm:$0xff]
      %v236 = vld [vmem:[%s1 + $0x128] sm:$0xff]
      %v237 = vld [vmem:[%s1 + $0x130] sm:$0xff]
      %v238 = vld [vmem:[%s1 + $0x138] sm:$0xff]
      %v239 = vld [vmem:[%s1 + $0x140] sm:$0xff]
      %v240 = vld [vmem:[%s1 + $0x148] sm:$0xff]
      %v241 = vld [vmem:[%s1 + $0x150] sm:$0xff]
      %v242 = vld [vmem:[%s1 + $0x158] sm:$0xff]
      %v243 = vld [vmem:[%s1 + $0x160] sm:$0xff]
      %v244 = vld [vmem:[%s1 + $0x168] sm:$0xff]
      %v245 = vld [vmem:[%s1 + $0x170] sm:$0xff]
      %v246 = vld [vmem:[%s1 + $0x178] sm:$0xff]
      %v247 = vld [vmem:[%s1 + $0x180] sm:$0xff]
      %v248 = vld [vmem:[%s1 + $0x188] sm:$0xff]
      %v249 = vld [vmem:[%s1 + $0x190] sm:$0xff]
      %v250 = vld [vmem:[%s1 + $0x198] sm:$0xff]
      %v251 = vld [vmem:[%s1 + $0x1a0] sm:$0xff]
      %v252 = vld [vmem:[%s1 + $0x1a8] sm:$0xff]
      %v253 = vld [vmem:[%s1 + $0x1b0] sm:$0xff]
      %v254 = vld [vmem:[%s1 + $0x1b8] sm:$0xff]
      %v255 = vld [vmem:[%s1 + $0x1c0] sm:$0xff]
      %v256 = vld [vmem:[%s1 + $0x1c8] sm:$0xff]
      %v257 = vld [vmem:[%s1 + $0x1d0] sm:$0xff]
      %v258 = vld [vmem:[%s1 + $0x1d8] sm:$0xff]
      %v259 = vld [vmem:[%s1 + $0x1e0] sm:$0xff]
      %v260 = vld [vmem:[%s1 + $0x1e8] sm:$0xff]
      %v261 = vld [vmem:[%s1 + $0x1f0] sm:$0xff]
      %v262 = vld [vmem:[%s1 + $0x1f8] sm:$0xff]
      %v263 = vld [vmem:[%s1 + $0x200] sm:$0xff]
      %v264 = vld [vmem:[%s1 + $0x208] sm:$0xff]
      %v265 = vld [vmem:[%s1 + $0x210] sm:$0xff]
      %v266 = vld [vmem:[%s1 + $0x218] sm:$0xff]
      %v267 = vld [vmem:[%s1 + $0x220] sm:$0xff]
      %v268 = vld [vmem:[%s1 + $0x228] sm:$0xff]
      %v269 = vld [vmem:[%s1 + $0x230] sm:$0xff]
      %v270 = vld [vmem:[%s1 + $0x238] sm:$0xff]
      %v271 = vld [vmem:[%s1 + $0x240] sm:$0xff]
      %v272 = vld [vmem:[%s1 + $0x248] sm:$0xff]
      %v273 = vld [vmem:[%s1 + $0x250] sm:$0xff]
      %v274 = vld [vmem:[%s1 + $0x258] sm:$0xff]
      %v275 = vld [vmem:[%s1 + $0x260] sm:$0xff]
      %v276 = vld [vmem:[%s1 + $0x268] sm:$0xff]
      %v277 = vld [vmem:[%s1 + $0x270] sm:$0xff]
      %v278 = vld [vmem:[%s1 + $0x278] sm:$0xff]
      %v279 = vld [vmem:[%s1 + $0x280] sm:$0xff]
      %v280 = vld [vmem:[%s1 + $0x288] sm:$0xff]
      %v281 = vld [vmem:[%s1 + $0x290] sm:$0xff]
      %v282 = vld [vmem:[%s1 + $0x298] sm:$0xff]
      %v283 = vld [vmem:[%s1 + $0x2a0] sm:$0xff]
      %v284 = vld [vmem:[%s1 + $0x2a8] sm:$0xff]
      %v285 = vld [vmem:[%s1 + $0x2b0] sm:$0xff]
      %v286 = vld [vmem:[%s1 + $0x2b8] sm:$0xff]
      %v287 = vld [vmem:[%s1 + $0x2c0] sm:$0xff]
      %v288 = vld [vmem:[%s1 + $0x2c8] sm:$0xff]
      %v289 = vld [vmem:[%s1 + $0x2d0] sm:$0xff]
      %v290 = vld [vmem:[%s1 + $0x2d8] sm:$0xff]
      %v291 = vld [vmem:[%s1 + $0x2e0] sm:$0xff]
      %v292 = vld [vmem:[%s1 + $0x2e8] sm:$0xff]
      %v293 = vld [vmem:[%s1 + $0x2f0] sm:$0xff]
      %v294 = vld [vmem:[%s1 + $0x2f8] sm:$0xff]
      %v295 = vld [vmem:[%s1 + $0x300] sm:$0xff]
      %v296 = vld [vmem:[%s1 + $0x308] sm:$0xff]
      %v297 = vld [vmem:[%s1 + $0x310] sm:$0xff]
      %v298 = vld [vmem:[%s1 + $0x318] sm:$0xff]
      %v299 = vld [vmem:[%s1 + $0x320] sm:$0xff]
      %v300 = vld [vmem:[%s1 + $0x328] sm:$0xff]
      %v301 = vld [vmem:[%s1 + $0x330] sm:$0xff]
      %v302 = vld [vmem:[%s1 + $0x338] sm:$0xff]
      %v303 = vld [vmem:[%s1 + $0x340] sm:$0xff]
      %v304 = vld [vmem:[%s1 + $0x348] sm:$0xff]
      %v305 = vld [vmem:[%s1 + $0x350] sm:$0xff]
      %v306 = vld [vmem:[%s1 + $0x358] sm:$0xff]
      %v307 = vld [vmem:[%s1 + $0x360] sm:$0xff]
      %v308 = vld [vmem:[%s1 + $0x368] sm:$0xff]
      %v309 = vld [vmem:[%s1 + $0x370] sm:$0xff]
      %v310 = vld [vmem:[%s1 + $0x378] sm:$0xff]
      %v311 = vld [vmem:[%s1 + $0x380] sm:$0xff]
      %v312 = vld [vmem:[%s1 + $0x388] sm:$0xff]
      %v313 = vld [vmem:[%s1 + $0x390] sm:$0xff]
      %v314 = vld [vmem:[%s1 + $0x398] sm:$0xff]
      %v315 = vld [vmem:[%s1 + $0x3a0] sm:$0xff]
      %v316 = vld [vmem:[%s1 + $0x3a8] sm:$0xff]
      %v317 = vld [vmem:[%s1 + $0x3b0] sm:$0xff]
      %v318 = vld [vmem:[%s1 + $0x3b8] sm:$0xff]
      %v319 = vld [vmem:[%s1 + $0x3c0] sm:$0xff]
      %v320 = vld [vmem:[%s1 + $0x3c8] sm:$0xff]
      %v321 = vld [vmem:[%s1 + $0x3d0] sm:$0xff]
      %v322 = vld [vmem:[%s1 + $0x3d8] sm:$0xff]
      %v323 = vld [vmem:[%s1 + $0x3e0] sm:$0xff]
      %v324 = vld [vmem:[%s1 + $0x3e8] sm:$0xff]
      %v325 = vld [vmem:[%s1 + $0x3f0] sm:$0xff]
      %v326 = vld [vmem:[%s1 + $0x3f8] sm:$0xff]
      %v327 = vld [vmem:[%s1 + $0x400] sm:$0xff]
      %v328 = vld [vmem:[%s1 + $0x408] sm:$0xff]
      %v329 = vld [vmem:[%s1 + $0x410] sm:$0xff]
      %v330 = vld [vmem:[%s1 + $0x418] sm:$0xff]
      %v331 = vld [vmem:[%s1 + $0x420] sm:$0xff]
      %v332 = vld [vmem:[%s1 + $0x428] sm:$0xff]
      %v333 = vld [vmem:[%s1 + $0x430] sm:$0xff]
      %v334 = vld [vmem:[%s1 + $0x438] sm:$0xff]
      %v335 = vld [vmem:[%s1 + $0x440] sm:$0xff]
      %v336 = vld [vmem:[%s1 + $0x448] sm:$0xff]
      %v337 = vld [vmem:[%s1 + $0x450] sm:$0xff]
      %v338 = vld [vmem:[%s1 + $0x458] sm:$0xff]
      %v339 = vld [vmem:[%s1 + $0x460] sm:$0xff]
      %v340 = vld [vmem:[%s1 + $0x468] sm:$0xff]
      %v341 = vld [vmem:[%s1 + $0x470] sm:$0xff]
      %v342 = vld [vmem:[%s1 + $0x478] sm:$0xff]
      %v343 = vld [vmem:[%s1 + $0x480] sm:$0xff]
      %v344 = vld [vmem:[%s1 + $0x488] sm:$0xff]
      %v345 = vld [vmem:[%s1 + $0x490] sm:$0xff]
      %v346 = vld [vmem:[%s1 + $0x498] sm:$0xff]
      %v347 = vld [vmem:[%s1 + $0x4a0] sm:$0xff]
      %v348 = vld [vmem:[%s1 + $0x4a8] sm:$0xff]
      %v349 = vld [vmem:[%s1 + $0x4b0] sm:$0xff]
      %v350 = vld [vmem:[%s1 + $0x4b8] sm:$0xff]
      %v351 = vld [vmem:[%s1 + $0x4c0] sm:$0xff]
      %v352 = vld [vmem:[%s1 + $0x4c8] sm:$0xff]
      %v353 = vld [vmem:[%s1 + $0x4d0] sm:$0xff]
      %v354 = vld [vmem:[%s1 + $0x4d8] sm:$0xff]
      %v355 = vld [vmem:[%s1 + $0x4e0] sm:$0xff]
      %v356 = vld [vmem:[%s1 + $0x4e8] sm:$0xff]
      %v357 = vld [vmem:[%s1 + $0x4f0] sm:$0xff]
      %v358 = vld [vmem:[%s1 + $0x4f8] sm:$0xff]
      %v359 = vld [vmem:[%s1 + $0x500] sm:$0xff]
      %v360 = vld [vmem:[%s1 + $0x508] sm:$0xff]
      %v361 = vld [vmem:[%s1 + $0x510] sm:$0xff]
      %v362 = vld [vmem:[%s1 + $0x518] sm:$0xff]
      %v363 = vld [vmem:[%s1 + $0x520] sm:$0xff]
      %v364 = vld [vmem:[%s1 + $0x528] sm:$0xff]
      %v365 = vld [vmem:[%s1 + $0x530] sm:$0xff]
      %v366 = vld [vmem:[%s1 + $0x538] sm:$0xff]
      %v367 = vld [vmem:[%s1 + $0x540] sm:$0xff]
      %v368 = vld [vmem:[%s1 + $0x548] sm:$0xff]
      %v369 = vld [vmem:[%s1 + $0x550] sm:$0xff]
      %v370 = vld [vmem:[%s1 + $0x558] sm:$0xff]
      %v371 = vld [vmem:[%s1 + $0x560] sm:$0xff]
      %v372 = vld [vmem:[%s1 + $0x568] sm:$0xff]
      %v373 = vld [vmem:[%s1 + $0x570] sm:$0xff]
      %v374 = vld [vmem:[%s1 + $0x578] sm:$0xff]
      %v375 = vld [vmem:[%s1 + $0x580] sm:$0xff]
      %v376 = vld [vmem:[%s1 + $0x588] sm:$0xff]
      %v377 = vld [vmem:[%s1 + $0x590] sm:$0xff]
      %v378 = vld [vmem:[%s1 + $0x598] sm:$0xff]
      %v379 = vld [vmem:[%s1 + $0x5a0] sm:$0xff]
      %v380 = vld [vmem:[%s1 + $0x5a8] sm:$0xff]
      %v381 = vld [vmem:[%s1 + $0x5b0] sm:$0xff]
      %v382 = vld [vmem:[%s1 + $0x5b8] sm:$0xff]
      %v383 = vld [vmem:[%s1 + $0x5c0] sm:$0xff]
      %v384 = vld [vmem:[%s1 + $0x5c8] sm:$0xff]
      %v385 = vld [vmem:[%s1 + $0x5d0] sm:$0xff]
      %v386 = vld [vmem:[%s1 + $0x5d8] sm:$0xff]
      %v387 = vld [vmem:[%s1 + $0x5e0] sm:$0xff]
      %v388 = vld [vmem:[%s1 + $0x5e8] sm:$0xff]
      %v389 = vld [vmem:[%s1 + $0x5f0] sm:$0xff]
      %v390 = vld [vmem:[%s1 + $0x5f8] sm:$0xff]
      %v391 = vld [vmem:[%s1 + $0x600] sm:$0xff]
      %v392 = vld [vmem:[%s1 + $0x608] sm:$0xff]
      %v393 = vld [vmem:[%s1 + $0x610] sm:$0xff]
      %v394 = vld [vmem:[%s1 + $0x618] sm:$0xff]
      %v395 = vld [vmem:[%s1 + $0x620] sm:$0xff]
      %v396 = vld [vmem:[%s1 + $0x628] sm:$0xff]
      %v397 = vld [vmem:[%s1 + $0x630] sm:$0xff]
      %v398 = vld [vmem:[%s1 + $0x638] sm:$0xff]
      %v399 = vld [vmem:[%s1 + $0x640] sm:$0xff]
      %v400 = vld [vmem:[%s1 + $0x648] sm:$0xff]
      %v401 = vld [vmem:[%s1 + $0x650] sm:$0xff]
      %v402 = vld [vmem:[%s1 + $0x658] sm:$0xff]
      %v403 = vld [vmem:[%s1 + $0x660] sm:$0xff]
      %v404 = vld [vmem:[%s1 + $0x668] sm:$0xff]
      %v405 = vld [vmem:[%s1 + $0x670] sm:$0xff]
      %v406 = vld [vmem:[%s1 + $0x678] sm:$0xff]
      %v407 = vld [vmem:[%s1 + $0x680] sm:$0xff]
      %v408 = vld [vmem:[%s1 + $0x688] sm:$0xff]
      %v409 = vld [vmem:[%s1 + $0x690] sm:$0xff]
      %v410 = vld [vmem:[%s1 + $0x698] sm:$0xff]
      %v411 = vld [vmem:[%s1 + $0x6a0] sm:$0xff]
      %v412 = vld [vmem:[%s1 + $0x6a8] sm:$0xff]
      %v413 = vld [vmem:[%s1 + $0x6b0] sm:$0xff]
      %v414 = vld [vmem:[%s1 + $0x6b8] sm:$0xff]
      %v415 = vld [vmem:[%s1 + $0x6c0] sm:$0xff]
      %v416 = vld [vmem:[%s1 + $0x6c8] sm:$0xff]
      %v417 = vld [vmem:[%s1 + $0x6d0] sm:$0xff]
      %v418 = vld [vmem:[%s1 + $0x6d8] sm:$0xff]
      %v419 = vld [vmem:[%s1 + $0x6e0] sm:$0xff]
      %v420 = vld [vmem:[%s1 + $0x6e8] sm:$0xff]
      %v421 = vld [vmem:[%s1 + $0x6f0] sm:$0xff]
      %v422 = vld [vmem:[%s1 + $0x6f8] sm:$0xff]
      %v423 = vld [vmem:[%s1 + $0x700] sm:$0xff]
      %v424 = vld [vmem:[%s1 + $0x708] sm:$0xff]
      %v425 = vld [vmem:[%s1 + $0x710] sm:$0xff]
      %v426 = vld [vmem:[%s1 + $0x718] sm:$0xff]
      %v427 = vld [vmem:[%s1 + $0x720] sm:$0xff]
      %v428 = vld [vmem:[%s1 + $0x728] sm:$0xff]
      %v429 = vld [vmem:[%s1 + $0x730] sm:$0xff]
      %v430 = vld [vmem:[%s1 + $0x738] sm:$0xff]
      %v431 = vld [vmem:[%s1 + $0x740] sm:$0xff]
      %v432 = vld [vmem:[%s1 + $0x748] sm:$0xff]
      %v433 = vld [vmem:[%s1 + $0x750] sm:$0xff]
      %v434 = vld [vmem:[%s1 + $0x758] sm:$0xff]
      %v435 = vld [vmem:[%s1 + $0x760] sm:$0xff]
      %v436 = vld [vmem:[%s1 + $0x768] sm:$0xff]
      %v437 = vld [vmem:[%s1 + $0x770] sm:$0xff]
      %v438 = vld [vmem:[%s1 + $0x778] sm:$0xff]
      %v439 = vld [vmem:[%s1 + $0x780] sm:$0xff]
      %v440 = vld [vmem:[%s1 + $0x788] sm:$0xff]
      %v441 = vld [vmem:[%s1 + $0x790] sm:$0xff]
      %v442 = vld [vmem:[%s1 + $0x798] sm:$0xff]
      %v443 = vld [vmem:[%s1 + $0x7a0] sm:$0xff]
      %v444 = vld [vmem:[%s1 + $0x7a8] sm:$0xff]
      %v445 = vld [vmem:[%s1 + $0x7b0] sm:$0xff]
      %v446 = vld [vmem:[%s1 + $0x7b8] sm:$0xff]
      %v447 = vld [vmem:[%s1 + $0x7c0] sm:$0xff]
      %v448 = vld [vmem:[%s1 + $0x7c8] sm:$0xff]
      %v449 = vld [vmem:[%s1 + $0x7d0] sm:$0xff]
      %v450 = vld [vmem:[%s1 + $0x7d8] sm:$0xff]
      %v451 = vld [vmem:[%s1 + $0x7e0] sm:$0xff]
      %v452 = vld [vmem:[%s1 + $0x7e8] sm:$0xff]
      %v453 = vld [vmem:[%s1 + $0x7f0] sm:$0xff]
      %v454 = vld [vmem:[%s1 + $0x7f8] sm:$0xff]
      %v455 = vld [vmem:[%s1 + $0x800] sm:$0xff]
      %v456 = vld [vmem:[%s1 + $0x808] sm:$0xff]
      %v457 = vld [vmem:[%s1 + $0x810] sm:$0xff]
      %v458 = vld [vmem:[%s1 + $0x818] sm:$0xff]
      %v459 = vld [vmem:[%s1 + $0x820] sm:$0xff]
      %v460 = vld [vmem:[%s1 + $0x828] sm:$0xff]
      %v461 = vld [vmem:[%s1 + $0x830] sm:$0xff]
      %v462 = vld [vmem:[%s1 + $0x838] sm:$0xff]
      %v463 = vld [vmem:[%s1 + $0x840] sm:$0xff]
      %v464 = vld [vmem:[%s1 + $0x848] sm:$0xff]
      %v465 = vld [vmem:[%s1 + $0x850] sm:$0xff]
      %v466 = vld [vmem:[%s1 + $0x858] sm:$0xff]
      %v467 = vld [vmem:[%s1 + $0x860] sm:$0xff]
      %v468 = vld [vmem:[%s1 + $0x868] sm:$0xff]
      %v469 = vld [vmem:[%s1 + $0x870] sm:$0xff]
      %v470 = vld [vmem:[%s1 + $0x878] sm:$0xff]
      %v471 = vld [vmem:[%s1 + $0x880] sm:$0xff]
      %v472 = vld [vmem:[%s1 + $0x888] sm:$0xff]
      %v473 = vld [vmem:[%s1 + $0x890] sm:$0xff]
      %v474 = vld [vmem:[%s1 + $0x898] sm:$0xff]
      %v475 = vld [vmem:[%s1 + $0x8a0] sm:$0xff]
      %v476 = vld [vmem:[%s1 + $0x8a8] sm:$0xff]
      %v477 = vld [vmem:[%s1 + $0x8b0] sm:$0xff]
      %v478 = vld [vmem:[%s1 + $0x8b8] sm:$0xff]
      %v479 = vld [vmem:[%s1 + $0x8c0] sm:$0xff]
      %v480 = vld [vmem:[%s1 + $0x8c8] sm:$0xff]
      %v481 = vld [vmem:[%s1 + $0x8d0] sm:$0xff]
      %v482 = vld [vmem:[%s1 + $0x8d8] sm:$0xff]
      %v483 = vld [vmem:[%s1 + $0x8e0] sm:$0xff]
      %v484 = vld [vmem:[%s1 + $0x8e8] sm:$0xff]
      %v485 = vld [vmem:[%s1 + $0x8f0] sm:$0xff]
      %v486 = vld [vmem:[%s1 + $0x8f8] sm:$0xff]
      %v487 = vld [vmem:[%s1 + $0x900] sm:$0xff]
      %v488 = vld [vmem:[%s1 + $0x908] sm:$0xff]
      %v489 = vld [vmem:[%s1 + $0x910] sm:$0xff]
      %v490 = vld [vmem:[%s1 + $0x918] sm:$0xff]
      %v491 = vld [vmem:[%s1 + $0x920] sm:$0xff]
      %v492 = vld [vmem:[%s1 + $0x928] sm:$0xff]
      %v493 = vld [vmem:[%s1 + $0x930] sm:$0xff]
      %v494 = vld [vmem:[%s1 + $0x938] sm:$0xff]
      %v495 = vld [vmem:[%s1 + $0x940] sm:$0xff]
      %v496 = vld [vmem:[%s1 + $0x948] sm:$0xff]
      %v497 = vld [vmem:[%s1 + $0x950] sm:$0xff]
      %v498 = vld [vmem:[%s1 + $0x958] sm:$0xff]
      %v499 = vld [vmem:[%s1 + $0x960] sm:$0xff]
      %v500 = vld [vmem:[%s1 + $0x968] sm:$0xff]
      %v501 = vld [vmem:[%s1 + $0x970] sm:$0xff]
      %v502 = vld [vmem:[%s1 + $0x978] sm:$0xff]
      %v503 = vld [vmem:[%s1 + $0x980] sm:$0xff]
      %v504 = vld [vmem:[%s1 + $0x988] sm:$0xff]
      %v505 = vld [vmem:[%s1 + $0x990] sm:$0xff]
      %v506 = vld [vmem:[%s1 + $0x998] sm:$0xff]
      %v507 = vld [vmem:[%s1 + $0x9a0] sm:$0xff]
      %v508 = vld [vmem:[%s1 + $0x9a8] sm:$0xff]
      %v509 = vld [vmem:[%s1 + $0x9b0] sm:$0xff]
      %v510 = vld [vmem:[%s1 + $0x9b8] sm:$0xff]
      %v511 = vld [vmem:[%s1 + $0x9c0] sm:$0xff]
      %v512 = vld [vmem:[%s1 + $0x9c8] sm:$0xff]
      %v513 = vld [vmem:[%s1 + $0x9d0] sm:$0xff]
      %v514 = vld [vmem:[%s1 + $0x9d8] sm:$0xff]
      %v515 = vld [vmem:[%s1 + $0x9e0] sm:$0xff]
      %v516 = vld [vmem:[%s1 + $0x9e8] sm:$0xff]
      %v517 = vld [vmem:[%s1 + $0x9f0] sm:$0xff]
      %v518 = vld [vmem:[%s1 + $0x9f8] sm:$0xff]
      %519 = vmatprep.subr.mxu0 %v275
      %520 = vmatpush1.msra.mxu0 %v274
      %521 = vmatprep.subr.mxu0 %v270
      %522 = vmatpush1.msra.mxu0 %v269
      %523 = vmatprep.subr.mxu0 %v265
      %524 = vmatpush1.msra.mxu0 %v264
      %525 = vmatprep.subr.mxu0 %v260
      %526 = vmatpush1.msra.mxu0 %v259
      %527 = vmatprep.subr.mxu0 %v255
      %528 = vmatpush1.msra.mxu0 %v254
      %529 = vmatprep.subr.mxu0 %v250
      %530 = vmatpush1.msra.mxu0 %v249
      %531 = vmatprep.subr.mxu0 %v245
      %532 = vmatpush1.msra.mxu0 %v244
      %533 = vmatprep.subr.mxu0 %v240
      %534 = vmatpush1.msra.mxu0 %v239
      %535 = vmatprep.subr.mxu0 %v235
      %536 = vmatpush1.msra.mxu0 %v234
      %537 = vmatprep.subr.mxu0 %v230
      %538 = vmatpush1.msra.mxu0 %v229
      %539 = vmatprep.subr.mxu0 %v225
      %540 = vmatpush1.msra.mxu0 %v224
      %541 = vmatprep.subr.mxu0 %v220
      %542 = vmatpush1.msra.mxu0 %v219
      %543 = vmatprep.subr.mxu0 %v215
      %544 = vmatpush1.msra.mxu0 %v214
      %545 = vmatprep.subr.mxu0 %v210
      %546 = vmatpush1.msra.mxu0 %v209
      %547 = vmatprep.subr.mxu0 %v205
      %548 = vmatpush1.msra.mxu0 %v204
      %549 = vmatprep.subr.mxu0 %v200
      %550 = vmatpush1.msra.mxu0 %v199
      %551 = vmatprep.subr.mxu0 %v355
      %552 = vmatpush2.msra.mxu0 %v354
      %553 = vmatprep.subr.mxu0 %v350
      %554 = vmatpush2.msra.mxu0 %v349
      %555 = vmatprep.subr.mxu0 %v345
      %556 = vmatpush2.msra.mxu0 %v344
      %557 = vmatprep.subr.mxu0 %v340
      %558 = vmatpush2.msra.mxu0 %v339
      %559 = vmatprep.subr.mxu0 %v335
      %560 = vmatpush2.msra.mxu0 %v334
      %561 = vmatprep.subr.mxu0 %v330
      %562 = vmatpush2.msra.mxu0 %v329
      %563 = vmatprep.subr.mxu0 %v325
      %564 = vmatpush2.msra.mxu0 %v324
      %565 = vmatprep.subr.mxu0 %v320
      %566 = vmatpush2.msra.mxu0 %v319
      %567 = vmatprep.subr.mxu0 %v315
      %568 = vmatpush2.msra.mxu0 %v314
      %569 = vmatprep.subr.mxu0 %v310
      %570 = vmatpush2.msra.mxu0 %v309
      %571 = vmatprep.subr.mxu0 %v305
      %572 = vmatpush2.msra.mxu0 %v304
      %573 = vmatprep.subr.mxu0 %v300
      %574 = vmatpush2.msra.mxu0 %v299
      %575 = vmatprep.subr.mxu0 %v295
      %576 = vmatpush2.msra.mxu0 %v294
      %577 = vmatprep.subr.mxu0 %v290
      %578 = vmatpush2.msra.mxu0 %v289
      %579 = vmatprep.subr.mxu0 %v285
      %580 = vmatpush2.msra.mxu0 %v284
      %581 = vmatprep.subr.mxu0 %v280
      %582 = vmatpush2.msra.mxu0 %v279
      %583 = vmatprep.mubr.f32.mxu0 %v172
      %584 = vmatmul.mubr.f32.gmra.mxu0 %v171
      %v585 = vpop.f32.mrf.mxu0
      %v586 = vadd.f32 0.0, %v585
      %v587 = vpop.f32.mrf.mxu0
      %v588 = vadd.f32 0.0, %v587
      %589 = vmatprep.mubr.f32.mxu0 %v176
      %590 = vmatmul.mubr.f32.gmra.mxu0 %v175
      %v591 = vpop.f32.mrf.mxu0
      %v592 = vadd.f32 0.0, %v591
      %v593 = vpop.f32.mrf.mxu0
      %v594 = vadd.f32 0.0, %v593
      %595 = vmatprep.mubr.f32.mxu0 %v180
      %596 = vmatmul.mubr.f32.gmra.mxu0 %v179
      %v597 = vpop.f32.mrf.mxu0
      %v598 = vadd.f32 0.0, %v597
      %v599 = vpop.f32.mrf.mxu0
      %v600 = vadd.f32 0.0, %v599
      %601 = vmatprep.mubr.f32.mxu0 %v184
      %602 = vmatmul.mubr.f32.gmra.mxu0 %v183
      %v603 = vpop.f32.mrf.mxu0
      %v604 = vadd.f32 0.0, %v603
      %v605 = vpop.f32.mrf.mxu0
      %v606 = vadd.f32 0.0, %v605
      %607 = vmatprep.mubr.f32.mxu0 %v188
      %608 = vmatmul.mubr.f32.gmra.mxu0 %v187
      %v609 = vpop.f32.mrf.mxu0
      %v610 = vadd.f32 0.0, %v609
      %v611 = vpop.f32.mrf.mxu0
      %v612 = vadd.f32 0.0, %v611
      %613 = vmatprep.mubr.f32.mxu0 %v192
      %614 = vmatmul.mubr.f32.gmra.mxu0 %v191
      %v615 = vpop.f32.mrf.mxu0
      %v616 = vadd.f32 0.0, %v615
      %v617 = vpop.f32.mrf.mxu0
      %v618 = vadd.f32 0.0, %v617
      %619 = vmatprep.mubr.f32.mxu0 %v196
      %620 = vmatmul.mubr.f32.gmra.mxu0 %v195
      %v621 = vpop.f32.mrf.mxu0
      %v622 = vadd.f32 0.0, %v621
      %v623 = vpop.f32.mrf.mxu0
      %v624 = vadd.f32 0.0, %v623
      %625 = vdwg.mxu0
      %626 = vmatprep.subr.mxu0 %v435
      %627 = vmatpush1.msra.mxu0 %v434
      %628 = vmatprep.subr.mxu0 %v430
      %629 = vmatpush1.msra.mxu0 %v429
      %630 = vmatprep.subr.mxu0 %v425
      %631 = vmatpush1.msra.mxu0 %v424
      %632 = vmatprep.subr.mxu0 %v420
      %633 = vmatpush1.msra.mxu0 %v419
      %634 = vmatprep.subr.mxu0 %v415
      %635 = vmatpush1.msra.mxu0 %v414
      %636 = vmatprep.subr.mxu0 %v410
      %637 = vmatpush1.msra.mxu0 %v409
      %638 = vmatprep.subr.mxu0 %v405
      %639 = vmatpush1.msra.mxu0 %v404
      %640 = vmatprep.subr.mxu0 %v400
      %641 = vmatpush1.msra.mxu0 %v399
      %642 = vmatprep.subr.mxu0 %v395
      %643 = vmatpush1.msra.mxu0 %v394
      %644 = vmatprep.subr.mxu0 %v390
      %645 = vmatpush1.msra.mxu0 %v389
      %646 = vmatprep.subr.mxu0 %v385
      %647 = vmatpush1.msra.mxu0 %v384
      %648 = vmatprep.subr.mxu0 %v380
      %649 = vmatpush1.msra.mxu0 %v379
      %650 = vmatprep.subr.mxu0 %v375
      %651 = vmatpush1.msra.mxu0 %v374
      %652 = vmatprep.subr.mxu0 %v370
      %653 = vmatpush1.msra.mxu0 %v369
      %654 = vmatprep.subr.mxu0 %v365
      %655 = vmatpush1.msra.mxu0 %v364
      %656 = vmatprep.subr.mxu0 %v360
      %657 = vmatpush1.msra.mxu0 %v359
      %658 = vmatprep.subr.mxu0 %v515
      %659 = vmatpush2.msra.mxu0 %v514
      %660 = vmatprep.subr.mxu0 %v510
      %661 = vmatpush2.msra.mxu0 %v509
      %662 = vmatprep.subr.mxu0 %v505
      %663 = vmatpush2.msra.mxu0 %v504
      %664 = vmatprep.subr.mxu0 %v500
      %665 = vmatpush2.msra.mxu0 %v499
      %666 = vmatprep.subr.mxu0 %v495
      %667 = vmatpush2.msra.mxu0 %v494
      %668 = vmatprep.subr.mxu0 %v490
      %669 = vmatpush2.msra.mxu0 %v489
      %670 = vmatprep.subr.mxu0 %v485
      %671 = vmatpush2.msra.mxu0 %v484
      %672 = vmatprep.subr.mxu0 %v480
      %673 = vmatpush2.msra.mxu0 %v479
      %674 = vmatprep.subr.mxu0 %v475
      %675 = vmatpush2.msra.mxu0 %v474
      %676 = vmatprep.subr.mxu0 %v470
      %677 = vmatpush2.msra.mxu0 %v469
      %678 = vmatprep.subr.mxu0 %v465
      %679 = vmatpush2.msra.mxu0 %v464
      %680 = vmatprep.subr.mxu0 %v460
      %681 = vmatpush2.msra.mxu0 %v459
      %682 = vmatprep.subr.mxu0 %v455
      %683 = vmatpush2.msra.mxu0 %v454
      %684 = vmatprep.subr.mxu0 %v450
      %685 = vmatpush2.msra.mxu0 %v449
      %686 = vmatprep.subr.mxu0 %v445
      %687 = vmatpush2.msra.mxu0 %v444
      %688 = vmatprep.subr.mxu0 %v440
      %689 = vmatpush2.msra.mxu0 %v439
      %690 = vmatprep.mubr.f32.mxu0 %v174
      %691 = vmatmul.mubr.f32.gmra.mxu0 %v173
      %v692 = vpop.f32.mrf.mxu0
      %v693 = vadd.f32 %v586, %v692
      %v694 = vpop.f32.mrf.mxu0
      %v695 = vadd.f32 %v588, %v694
      %696 = vmatprep.mubr.f32.mxu0 %v178
      %697 = vmatmul.mubr.f32.gmra.mxu0 %v177
      %v698 = vpop.f32.mrf.mxu0
      %v699 = vadd.f32 %v592, %v698
      %v700 = vpop.f32.mrf.mxu0
      %v701 = vadd.f32 %v594, %v700
      %702 = vmatprep.mubr.f32.mxu0 %v182
      %703 = vmatmul.mubr.f32.gmra.mxu0 %v181
      %v704 = vpop.f32.mrf.mxu0
      %v705 = vadd.f32 %v598, %v704
      %v706 = vpop.f32.mrf.mxu0
      %v707 = vadd.f32 %v600, %v706
      %708 = vmatprep.mubr.f32.mxu0 %v186
      %709 = vmatmul.mubr.f32.gmra.mxu0 %v185
      %v710 = vpop.f32.mrf.mxu0
      %v711 = vadd.f32 %v604, %v710
      %v712 = vpop.f32.mrf.mxu0
      %v713 = vadd.f32 %v606, %v712
      %714 = vmatprep.mubr.f32.mxu0 %v190
      %715 = vmatmul.mubr.f32.gmra.mxu0 %v189
      %v716 = vpop.f32.mrf.mxu0
      %v717 = vadd.f32 %v610, %v716
      %v718 = vpop.f32.mrf.mxu0
      %v719 = vadd.f32 %v612, %v718
      %720 = vmatprep.mubr.f32.mxu0 %v194
      %721 = vmatmul.mubr.f32.gmra.mxu0 %v193
      %v722 = vpop.f32.mrf.mxu0
      %v723 = vadd.f32 %v616, %v722
      %v724 = vpop.f32.mrf.mxu0
      %v725 = vadd.f32 %v618, %v724
      %726 = vmatprep.mubr.f32.mxu0 %v198
      %727 = vmatmul.mubr.f32.gmra.mxu0 %v197
      %v728 = vpop.f32.mrf.mxu0
      %v729 = vadd.f32 %v622, %v728
      %v730 = vpop.f32.mrf.mxu0
      %v731 = vadd.f32 %v624, %v730
      %732 = vdwg.mxu0
      %733 = vmatprep.subr.mxu0 %v277
      %734 = vmatpush1.msra.mxu0 %v276
      %735 = vmatprep.subr.mxu0 %v272
      %736 = vmatpush1.msra.mxu0 %v271
      %737 = vmatprep.subr.mxu0 %v267
      %738 = vmatpush1.msra.mxu0 %v266
      %739 = vmatprep.subr.mxu0 %v262
      %740 = vmatpush1.msra.mxu0 %v261
      %741 = vmatprep.subr.mxu0 %v257
      %742 = vmatpush1.msra.mxu0 %v256
      %743 = vmatprep.subr.mxu0 %v252
      %744 = vmatpush1.msra.mxu0 %v251
      %745 = vmatprep.subr.mxu0 %v247
      %746 = vmatpush1.msra.mxu0 %v246
      %747 = vmatprep.subr.mxu0 %v242
      %748 = vmatpush1.msra.mxu0 %v241
      %749 = vmatprep.subr.mxu0 %v237
      %750 = vmatpush1.msra.mxu0 %v236
      %751 = vmatprep.subr.mxu0 %v232
      %752 = vmatpush1.msra.mxu0 %v231
      %753 = vmatprep.subr.mxu0 %v227
      %754 = vmatpush1.msra.mxu0 %v226
      %755 = vmatprep.subr.mxu0 %v222
      %756 = vmatpush1.msra.mxu0 %v221
      %757 = vmatprep.subr.mxu0 %v217
      %758 = vmatpush1.msra.mxu0 %v216
      %759 = vmatprep.subr.mxu0 %v212
      %760 = vmatpush1.msra.mxu0 %v211
      %761 = vmatprep.subr.mxu0 %v207
      %762 = vmatpush1.msra.mxu0 %v206
      %763 = vmatprep.subr.mxu0 %v202
      %764 = vmatpush1.msra.mxu0 %v201
      %765 = vmatprep.subr.mxu0 %v357
      %766 = vmatpush2.msra.mxu0 %v356
      %767 = vmatprep.subr.mxu0 %v352
      %768 = vmatpush2.msra.mxu0 %v351
      %769 = vmatprep.subr.mxu0 %v347
      %770 = vmatpush2.msra.mxu0 %v346
      %771 = vmatprep.subr.mxu0 %v342
      %772 = vmatpush2.msra.mxu0 %v341
      %773 = vmatprep.subr.mxu0 %v337
      %774 = vmatpush2.msra.mxu0 %v336
      %775 = vmatprep.subr.mxu0 %v332
      %776 = vmatpush2.msra.mxu0 %v331
      %777 = vmatprep.subr.mxu0 %v327
      %778 = vmatpush2.msra.mxu0 %v326
      %779 = vmatprep.subr.mxu0 %v322
      %780 = vmatpush2.msra.mxu0 %v321
      %781 = vmatprep.subr.mxu0 %v317
      %782 = vmatpush2.msra.mxu0 %v316
      %783 = vmatprep.subr.mxu0 %v312
      %784 = vmatpush2.msra.mxu0 %v311
      %785 = vmatprep.subr.mxu0 %v307
      %786 = vmatpush2.msra.mxu0 %v306
      %787 = vmatprep.subr.mxu0 %v302
      %788 = vmatpush2.msra.mxu0 %v301
      %789 = vmatprep.subr.mxu0 %v297
      %790 = vmatpush2.msra.mxu0 %v296
      %791 = vmatprep.subr.mxu0 %v292
      %792 = vmatpush2.msra.mxu0 %v291
      %793 = vmatprep.subr.mxu0 %v287
      %794 = vmatpush2.msra.mxu0 %v286
      %795 = vmatprep.subr.mxu0 %v282
      %796 = vmatpush2.msra.mxu0 %v281
      %797 = vmatprep.mubr.f32.mxu0 %v172
      %798 = vmatmul.mubr.f32.gmra.mxu0 %v171
      %v799 = vpop.f32.mrf.mxu0
      %v800 = vadd.f32 0.0, %v799
      %v801 = vpop.f32.mrf.mxu0
      %v802 = vadd.f32 0.0, %v801
      %803 = vmatprep.mubr.f32.mxu0 %v176
      %804 = vmatmul.mubr.f32.gmra.mxu0 %v175
      %v805 = vpop.f32.mrf.mxu0
      %v806 = vadd.f32 0.0, %v805
      %v807 = vpop.f32.mrf.mxu0
      %v808 = vadd.f32 0.0, %v807
      %809 = vmatprep.mubr.f32.mxu0 %v180
      %810 = vmatmul.mubr.f32.gmra.mxu0 %v179
      %v811 = vpop.f32.mrf.mxu0
      %v812 = vadd.f32 0.0, %v811
      %v813 = vpop.f32.mrf.mxu0
      %v814 = vadd.f32 0.0, %v813
      %815 = vmatprep.mubr.f32.mxu0 %v184
      %816 = vmatmul.mubr.f32.gmra.mxu0 %v183
      %v817 = vpop.f32.mrf.mxu0
      %v818 = vadd.f32 0.0, %v817
      %v819 = vpop.f32.mrf.mxu0
      %v820 = vadd.f32 0.0, %v819
      %821 = vmatprep.mubr.f32.mxu0 %v188
      %822 = vmatmul.mubr.f32.gmra.mxu0 %v187
      %v823 = vpop.f32.mrf.mxu0
      %v824 = vadd.f32 0.0, %v823
      %v825 = vpop.f32.mrf.mxu0
      %v826 = vadd.f32 0.0, %v825
      %827 = vmatprep.mubr.f32.mxu0 %v192
      %828 = vmatmul.mubr.f32.gmra.mxu0 %v191
      %v829 = vpop.f32.mrf.mxu0
      %v830 = vadd.f32 0.0, %v829
      %v831 = vpop.f32.mrf.mxu0
      %v832 = vadd.f32 0.0, %v831
      %833 = vmatprep.mubr.f32.mxu0 %v196
      %834 = vmatmul.mubr.f32.gmra.mxu0 %v195
      %v835 = vpop.f32.mrf.mxu0
      %v836 = vadd.f32 0.0, %v835
      %v837 = vpop.f32.mrf.mxu0
      %v838 = vadd.f32 0.0, %v837
      %839 = vdwg.mxu0
      %840 = vmatprep.subr.mxu0 %v437
      %841 = vmatpush1.msra.mxu0 %v436
      %842 = vmatprep.subr.mxu0 %v432
      %843 = vmatpush1.msra.mxu0 %v431
      %844 = vmatprep.subr.mxu0 %v427
      %845 = vmatpush1.msra.mxu0 %v426
      %846 = vmatprep.subr.mxu0 %v422
      %847 = vmatpush1.msra.mxu0 %v421
      %848 = vmatprep.subr.mxu0 %v417
      %849 = vmatpush1.msra.mxu0 %v416
      %850 = vmatprep.subr.mxu0 %v412
      %851 = vmatpush1.msra.mxu0 %v411
      %852 = vmatprep.subr.mxu0 %v407
      %853 = vmatpush1.msra.mxu0 %v406
      %854 = vmatprep.subr.mxu0 %v402
      %855 = vmatpush1.msra.mxu0 %v401
      %856 = vmatprep.subr.mxu0 %v397
      %857 = vmatpush1.msra.mxu0 %v396
      %858 = vmatprep.subr.mxu0 %v392
      %859 = vmatpush1.msra.mxu0 %v391
      %860 = vmatprep.subr.mxu0 %v387
      %861 = vmatpush1.msra.mxu0 %v386
      %862 = vmatprep.subr.mxu0 %v382
      %863 = vmatpush1.msra.mxu0 %v381
      %864 = vmatprep.subr.mxu0 %v377
      %865 = vmatpush1.msra.mxu0 %v376
      %866 = vmatprep.subr.mxu0 %v372
      %867 = vmatpush1.msra.mxu0 %v371
      %868 = vmatprep.subr.mxu0 %v367
      %869 = vmatpush1.msra.mxu0 %v366
      %870 = vmatprep.subr.mxu0 %v362
      %871 = vmatpush1.msra.mxu0 %v361
      %872 = vmatprep.subr.mxu0 %v517
      %873 = vmatpush2.msra.mxu0 %v516
      %874 = vmatprep.subr.mxu0 %v512
      %875 = vmatpush2.msra.mxu0 %v511
      %876 = vmatprep.subr.mxu0 %v507
      %877 = vmatpush2.msra.mxu0 %v506
      %878 = vmatprep.subr.mxu0 %v502
      %879 = vmatpush2.msra.mxu0 %v501
      %880 = vmatprep.subr.mxu0 %v497
      %881 = vmatpush2.msra.mxu0 %v496
      %882 = vmatprep.subr.mxu0 %v492
      %883 = vmatpush2.msra.mxu0 %v491
      %884 = vmatprep.subr.mxu0 %v487
      %885 = vmatpush2.msra.mxu0 %v486
      %886 = vmatprep.subr.mxu0 %v482
      %887 = vmatpush2.msra.mxu0 %v481
      %888 = vmatprep.subr.mxu0 %v477
      %889 = vmatpush2.msra.mxu0 %v476
      %890 = vmatprep.subr.mxu0 %v472
      %891 = vmatpush2.msra.mxu0 %v471
      %892 = vmatprep.subr.mxu0 %v467
      %893 = vmatpush2.msra.mxu0 %v466
      %894 = vmatprep.subr.mxu0 %v462
      %895 = vmatpush2.msra.mxu0 %v461
      %896 = vmatprep.subr.mxu0 %v457
      %897 = vmatpush2.msra.mxu0 %v456
      %898 = vmatprep.subr.mxu0 %v452
      %899 = vmatpush2.msra.mxu0 %v451
      %900 = vmatprep.subr.mxu0 %v447
      %901 = vmatpush2.msra.mxu0 %v446
      %902 = vmatprep.subr.mxu0 %v442
      %903 = vmatpush2.msra.mxu0 %v441
      %904 = vmatprep.mubr.f32.mxu0 %v174
      %905 = vmatmul.mubr.f32.gmra.mxu0 %v173
      %v906 = vpop.f32.mrf.mxu0
      %v907 = vadd.f32 %v800, %v906
      %v908 = vpop.f32.mrf.mxu0
      %v909 = vadd.f32 %v802, %v908
      %910 = vmatprep.mubr.f32.mxu0 %v178
      %911 = vmatmul.mubr.f32.gmra.mxu0 %v177
      %v912 = vpop.f32.mrf.mxu0
      %v913 = vadd.f32 %v806, %v912
      %v914 = vpop.f32.mrf.mxu0
      %v915 = vadd.f32 %v808, %v914
      %916 = vmatprep.mubr.f32.mxu0 %v182
      %917 = vmatmul.mubr.f32.gmra.mxu0 %v181
      %v918 = vpop.f32.mrf.mxu0
      %v919 = vadd.f32 %v812, %v918
      %v920 = vpop.f32.mrf.mxu0
      %v921 = vadd.f32 %v814, %v920
      %922 = vmatprep.mubr.f32.mxu0 %v186
      %923 = vmatmul.mubr.f32.gmra.mxu0 %v185
      %v924 = vpop.f32.mrf.mxu0
      %v925 = vadd.f32 %v818, %v924
      %v926 = vpop.f32.mrf.mxu0
      %v927 = vadd.f32 %v820, %v926
      %928 = vmatprep.mubr.f32.mxu0 %v190
      %929 = vmatmul.mubr.f32.gmra.mxu0 %v189
      %v930 = vpop.f32.mrf.mxu0
      %v931 = vadd.f32 %v824, %v930
      %v932 = vpop.f32.mrf.mxu0
      %v933 = vadd.f32 %v826, %v932
      %934 = vmatprep.mubr.f32.mxu0 %v194
      %935 = vmatmul.mubr.f32.gmra.mxu0 %v193
      %v936 = vpop.f32.mrf.mxu0
      %v937 = vadd.f32 %v830, %v936
      %v938 = vpop.f32.mrf.mxu0
      %v939 = vadd.f32 %v832, %v938
      %940 = vmatprep.mubr.f32.mxu0 %v198
      %941 = vmatmul.mubr.f32.gmra.mxu0 %v197
      %v942 = vpop.f32.mrf.mxu0
      %v943 = vadd.f32 %v836, %v942
      %v944 = vpop.f32.mrf.mxu0
      %v945 = vadd.f32 %v838, %v944
      %946 = vdwg.mxu0
      %947 = vmatprep.subr.mxu0 0.0
      %948 = vmatpush1.msra.mxu0 %v278
      %949 = vmatprep.subr.mxu0 0.0
      %950 = vmatpush1.msra.mxu0 %v273
      %951 = vmatprep.subr.mxu0 0.0
      %952 = vmatpush1.msra.mxu0 %v268
      %953 = vmatprep.subr.mxu0 0.0
      %954 = vmatpush1.msra.mxu0 %v263
      %955 = vmatprep.subr.mxu0 0.0
      %956 = vmatpush1.msra.mxu0 %v258
      %957 = vmatprep.subr.mxu0 0.0
      %958 = vmatpush1.msra.mxu0 %v253
      %959 = vmatprep.subr.mxu0 0.0
      %960 = vmatpush1.msra.mxu0 %v248
      %961 = vmatprep.subr.mxu0 0.0
      %962 = vmatpush1.msra.mxu0 %v243
      %963 = vmatprep.subr.mxu0 0.0
      %964 = vmatpush1.msra.mxu0 %v238
      %965 = vmatprep.subr.mxu0 0.0
      %966 = vmatpush1.msra.mxu0 %v233
      %967 = vmatprep.subr.mxu0 0.0
      %968 = vmatpush1.msra.mxu0 %v228
      %969 = vmatprep.subr.mxu0 0.0
      %970 = vmatpush1.msra.mxu0 %v223
      %971 = vmatprep.subr.mxu0 0.0
      %972 = vmatpush1.msra.mxu0 %v218
      %973 = vmatprep.subr.mxu0 0.0
      %974 = vmatpush1.msra.mxu0 %v213
      %975 = vmatprep.subr.mxu0 0.0
      %976 = vmatpush1.msra.mxu0 %v208
      %977 = vmatprep.subr.mxu0 0.0
      %978 = vmatpush1.msra.mxu0 %v203
      %979 = vmatprep.subr.mxu0 0.0
      %980 = vmatpush2.msra.mxu0 %v358
      %981 = vmatprep.subr.mxu0 0.0
      %982 = vmatpush2.msra.mxu0 %v353
      %983 = vmatprep.subr.mxu0 0.0
      %984 = vmatpush2.msra.mxu0 %v348
      %985 = vmatprep.subr.mxu0 0.0
      %986 = vmatpush2.msra.mxu0 %v343
      %987 = vmatprep.subr.mxu0 0.0
      %988 = vmatpush2.msra.mxu0 %v338
      %989 = vmatprep.subr.mxu0 0.0
      %990 = vmatpush2.msra.mxu0 %v333
      %991 = vmatprep.subr.mxu0 0.0
      %992 = vmatpush2.msra.mxu0 %v328
      %993 = vmatprep.subr.mxu0 0.0
      %994 = vmatpush2.msra.mxu0 %v323
      %995 = vmatprep.subr.mxu0 0.0
      %996 = vmatpush2.msra.mxu0 %v318
      %997 = vmatprep.subr.mxu0 0.0
      %998 = vmatpush2.msra.mxu0 %v313
      %999 = vmatprep.subr.mxu0 0.0
      %1000 = vmatpush2.msra.mxu0 %v308
      %1001 = vmatprep.subr.mxu0 0.0
      %1002 = vmatpush2.msra.mxu0 %v303
      %1003 = vmatprep.subr.mxu0 0.0
      %1004 = vmatpush2.msra.mxu0 %v298
      %1005 = vmatprep.subr.mxu0 0.0
      %1006 = vmatpush2.msra.mxu0 %v293
      %1007 = vmatprep.subr.mxu0 0.0
      %1008 = vmatpush2.msra.mxu0 %v288
      %1009 = vmatprep.subr.mxu0 0.0
      %1010 = vmatpush2.msra.mxu0 %v283
      %1011 = vmatprep.mubr.f32.mxu0 %v172
      %1012 = vmatmul.mubr.f32.gmra.mxu0 %v171
      %v1013 = vpop.f32.mrf.mxu0
      %v1014 = vadd.f32 0.0, %v1013
      %v1015 = vpop.f32.mrf.mxu0
      %1016 = vmatprep.mubr.f32.mxu0 %v176
      %1017 = vmatmul.mubr.f32.gmra.mxu0 %v175
      %v1018 = vpop.f32.mrf.mxu0
      %v1019 = vadd.f32 0.0, %v1018
      %v1020 = vpop.f32.mrf.mxu0
      %1021 = vmatprep.mubr.f32.mxu0 %v180
      %1022 = vmatmul.mubr.f32.gmra.mxu0 %v179
      %v1023 = vpop.f32.mrf.mxu0
      %v1024 = vadd.f32 0.0, %v1023
      %v1025 = vpop.f32.mrf.mxu0
      %1026 = vmatprep.mubr.f32.mxu0 %v184
      %1027 = vmatmul.mubr.f32.gmra.mxu0 %v183
      %v1028 = vpop.f32.mrf.mxu0
      %v1029 = vadd.f32 0.0, %v1028
      %v1030 = vpop.f32.mrf.mxu0
      %1031 = vmatprep.mubr.f32.mxu0 %v188
      %1032 = vmatmul.mubr.f32.gmra.mxu0 %v187
      %v1033 = vpop.f32.mrf.mxu0
      %v1034 = vadd.f32 0.0, %v1033
      %v1035 = vpop.f32.mrf.mxu0
      %1036 = vmatprep.mubr.f32.mxu0 %v192
      %1037 = vmatmul.mubr.f32.gmra.mxu0 %v191
      %v1038 = vpop.f32.mrf.mxu0
      %v1039 = vadd.f32 0.0, %v1038
      %v1040 = vpop.f32.mrf.mxu0
      %1041 = vmatprep.mubr.f32.mxu0 %v196
      %1042 = vmatmul.mubr.f32.gmra.mxu0 %v195
      %v1043 = vpop.f32.mrf.mxu0
      %v1044 = vadd.f32 0.0, %v1043
      %v1045 = vpop.f32.mrf.mxu0
      %1046 = vdwg.mxu0
      %1047 = vmatprep.subr.mxu0 0.0
      %1048 = vmatpush1.msra.mxu0 %v438
      %1049 = vmatprep.subr.mxu0 0.0
      %1050 = vmatpush1.msra.mxu0 %v433
      %1051 = vmatprep.subr.mxu0 0.0
      %1052 = vmatpush1.msra.mxu0 %v428
      %1053 = vmatprep.subr.mxu0 0.0
      %1054 = vmatpush1.msra.mxu0 %v423
      %1055 = vmatprep.subr.mxu0 0.0
      %1056 = vmatpush1.msra.mxu0 %v418
      %1057 = vmatprep.subr.mxu0 0.0
      %1058 = vmatpush1.msra.mxu0 %v413
      %1059 = vmatprep.subr.mxu0 0.0
      %1060 = vmatpush1.msra.mxu0 %v408
      %1061 = vmatprep.subr.mxu0 0.0
      %1062 = vmatpush1.msra.mxu0 %v403
      %1063 = vmatprep.subr.mxu0 0.0
      %1064 = vmatpush1.msra.mxu0 %v398
      %1065 = vmatprep.subr.mxu0 0.0
      %1066 = vmatpush1.msra.mxu0 %v393
      %1067 = vmatprep.subr.mxu0 0.0
      %1068 = vmatpush1.msra.mxu0 %v388
      %1069 = vmatprep.subr.mxu0 0.0
      %1070 = vmatpush1.msra.mxu0 %v383
      %1071 = vmatprep.subr.mxu0 0.0
      %1072 = vmatpush1.msra.mxu0 %v378
      %1073 = vmatprep.subr.mxu0 0.0
      %1074 = vmatpush1.msra.mxu0 %v373
      %1075 = vmatprep.subr.mxu0 0.0
      %1076 = vmatpush1.msra.mxu0 %v368
      %1077 = vmatprep.subr.mxu0 0.0
      %1078 = vmatpush1.msra.mxu0 %v363
      %1079 = vmatprep.subr.mxu0 0.0
      %1080 = vmatpush2.msra.mxu0 %v518
      %1081 = vmatprep.subr.mxu0 0.0
      %1082 = vmatpush2.msra.mxu0 %v513
      %1083 = vmatprep.subr.mxu0 0.0
      %1084 = vmatpush2.msra.mxu0 %v508
      %1085 = vmatprep.subr.mxu0 0.0
      %1086 = vmatpush2.msra.mxu0 %v503
      %1087 = vmatprep.subr.mxu0 0.0
      %1088 = vmatpush2.msra.mxu0 %v498
      %1089 = vmatprep.subr.mxu0 0.0
      %1090 = vmatpush2.msra.mxu0 %v493
      %1091 = vmatprep.subr.mxu0 0.0
      %1092 = vmatpush2.msra.mxu0 %v488
      %1093 = vmatprep.subr.mxu0 0.0
      %1094 = vmatpush2.msra.mxu0 %v483
      %1095 = vmatprep.subr.mxu0 0.0
      %1096 = vmatpush2.msra.mxu0 %v478
      %1097 = vmatprep.subr.mxu0 0.0
      %1098 = vmatpush2.msra.mxu0 %v473
      %1099 = vmatprep.subr.mxu0 0.0
      %1100 = vmatpush2.msra.mxu0 %v468
      %1101 = vmatprep.subr.mxu0 0.0
      %1102 = vmatpush2.msra.mxu0 %v463
      %1103 = vmatprep.subr.mxu0 0.0
      %1104 = vmatpush2.msra.mxu0 %v458
      %1105 = vmatprep.subr.mxu0 0.0
      %1106 = vmatpush2.msra.mxu0 %v453
      %1107 = vmatprep.subr.mxu0 0.0
      %1108 = vmatpush2.msra.mxu0 %v448
      %1109 = vmatprep.subr.mxu0 0.0
      %1110 = vmatpush2.msra.mxu0 %v443
      %1111 = vmatprep.mubr.f32.mxu0 %v174
      %1112 = vmatmul.mubr.f32.gmra.mxu0 %v173
      %v1113 = vpop.f32.mrf.mxu0
      %v1114 = vadd.f32 %v1014, %v1113
      %v1115 = vpop.f32.mrf.mxu0
      %1116 = vmatprep.mubr.f32.mxu0 %v178
      %1117 = vmatmul.mubr.f32.gmra.mxu0 %v177
      %v1118 = vpop.f32.mrf.mxu0
      %v1119 = vadd.f32 %v1019, %v1118
      %v1120 = vpop.f32.mrf.mxu0
      %1121 = vmatprep.mubr.f32.mxu0 %v182
      %1122 = vmatmul.mubr.f32.gmra.mxu0 %v181
      %v1123 = vpop.f32.mrf.mxu0
      %v1124 = vadd.f32 %v1024, %v1123
      %v1125 = vpop.f32.mrf.mxu0
      %1126 = vmatprep.mubr.f32.mxu0 %v186
      %1127 = vmatmul.mubr.f32.gmra.mxu0 %v185
      %v1128 = vpop.f32.mrf.mxu0
      %v1129 = vadd.f32 %v1029, %v1128
      %v1130 = vpop.f32.mrf.mxu0
      %1131 = vmatprep.mubr.f32.mxu0 %v190
      %1132 = vmatmul.mubr.f32.gmra.mxu0 %v189
      %v1133 = vpop.f32.mrf.mxu0
      %v1134 = vadd.f32 %v1034, %v1133
      %v1135 = vpop.f32.mrf.mxu0
      %1136 = vmatprep.mubr.f32.mxu0 %v194
      %1137 = vmatmul.mubr.f32.gmra.mxu0 %v193
      %v1138 = vpop.f32.mrf.mxu0
      %v1139 = vadd.f32 %v1039, %v1138
      %v1140 = vpop.f32.mrf.mxu0
      %1141 = vmatprep.mubr.f32.mxu0 %v198
      %1142 = vmatmul.mubr.f32.gmra.mxu0 %v197
      %v1143 = vpop.f32.mrf.mxu0
      %v1144 = vadd.f32 %v1044, %v1143
      %v1145 = vpop.f32.mrf.mxu0
      %1146 = vdwg.mxu0
      %v1147 = vld [vmem:[%s2] sm:$0xff]
      %v1148 = vld [vmem:[%s2 + $0x8] sm:$0xff]
      %v1149 = vld [vmem:[%s2 + $0x10] sm:$0xff]
      %v1150 = vld [vmem:[%s2 + $0x18] sm:$0xff]
      %v1151 = vld [vmem:[%s2 + $0x20] sm:$0xff]
      %v1152 = vld [vmem:[%s2 + $0x28] sm:$0xff]
      %v1153 = vld [vmem:[%s2 + $0x30] sm:$0x1]
      %s1154 = scalar_lea.vmem %s2, 56
      %v1155 = vld [vmem:[%s1154] sm:$0xff]
      %v1156 = vld [vmem:[%s1154 + $0x8] sm:$0xff]
      %v1157 = vld [vmem:[%s1154 + $0x10] sm:$0xff]
      %v1158 = vld [vmem:[%s1154 + $0x18] sm:$0xff]
      %v1159 = vld [vmem:[%s1154 + $0x20] sm:$0xff]
      %v1160 = vld [vmem:[%s1154 + $0x28] sm:$0xff]
      %v1161 = vld [vmem:[%s1154 + $0x30] sm:$0x1]
      %1169 = vrot.lane.b32.xlu0 %v693, 64
      %v1170 = vpop.permute.xlu0 %1169
      %1171 = vrot.lane.b32.xlu0 %v699, 64
      %v1172 = vpop.permute.xlu0 %1171
      %1173 = vrot.lane.b32.xlu0 %v705, 64
      %v1174 = vpop.permute.xlu0 %1173
      %1175 = vrot.lane.b32.xlu0 %v711, 64
      %v1176 = vpop.permute.xlu0 %1175
      %1177 = vrot.lane.b32.xlu0 %v717, 64
      %v1178 = vpop.permute.xlu0 %1177
      %1179 = vrot.lane.b32.xlu0 %v723, 64
      %v1180 = vpop.permute.xlu0 %1179
      %1181 = vrot.lane.b32.xlu0 %v729, 64
      %v1182 = vpop.permute.xlu0 %1181
      %vm1189 = vcmask 400384
      %v1191 = vsel %vm1189, %v1155, 0
      %v1194 = vsel %vm1189, %v1156, 0
      %v1197 = vsel %vm1189, %v1157, 0
      %v1200 = vsel %vm1189, %v1158, 0
      %v1203 = vsel %vm1189, %v1159, 0
      %v1206 = vsel %vm1189, %v1160, 0
      %v1209 = vsel %vm1189, %v1161, 0
      %vm1211 = vcmask 1040384
      %v1212 = vsel %vm1211, %v1182, 0
      %1214 = vmatprep.subr.mxu0 0.0
      %1215 = vmatpush1.msra.mxu0 0.0
      %1216 = vmatprep.subr.mxu0 0.0
      %1217 = vmatpush1.msra.mxu0 0.0
      %1218 = vmatprep.subr.mxu0 0.0
      %1219 = vmatpush1.msra.mxu0 0.0
      %1220 = vmatprep.subr.mxu0 0.0
      %1221 = vmatpush1.msra.mxu0 0.0
      %1222 = vmatprep.subr.mxu0 0.0
      %1223 = vmatpush1.msra.mxu0 0.0
      %1224 = vmatprep.subr.mxu0 0.0
      %1225 = vmatpush1.msra.mxu0 0.0
      %1226 = vmatprep.subr.mxu0 0.0
      %1227 = vmatpush1.msra.mxu0 0.0
      %1228 = vmatprep.subr.mxu0 0.0
      %1229 = vmatpush1.msra.mxu0 0.0
      %1230 = vmatprep.subr.mxu0 0.0
      %1231 = vmatpush1.msra.mxu0 0.0
      %1232 = vmatprep.subr.mxu0 0.0
      %1233 = vmatpush1.msra.mxu0 %v1212
      %1234 = vmatprep.subr.mxu0 0.0
      %1235 = vmatpush1.msra.mxu0 %v1180
      %1236 = vmatprep.subr.mxu0 0.0
      %1237 = vmatpush1.msra.mxu0 %v1178
      %1238 = vmatprep.subr.mxu0 0.0
      %1239 = vmatpush1.msra.mxu0 %v1176
      %1240 = vmatprep.subr.mxu0 0.0
      %1241 = vmatpush1.msra.mxu0 %v1174
      %1242 = vmatprep.subr.mxu0 0.0
      %1243 = vmatpush1.msra.mxu0 %v1172
      %1244 = vmatprep.subr.mxu0 0.0
      %1245 = vmatpush1.msra.mxu0 %v1170
      %1246 = vmatprep.subr.mxu0 0.0
      %1247 = vmatpush2.msra.mxu0 0.0
      %1248 = vmatprep.subr.mxu0 0.0
      %1249 = vmatpush2.msra.mxu0 0.0
      %1250 = vmatprep.subr.mxu0 0.0
      %1251 = vmatpush2.msra.mxu0 0.0
      %1252 = vmatprep.subr.mxu0 0.0
      %1253 = vmatpush2.msra.mxu0 0.0
      %1254 = vmatprep.subr.mxu0 0.0
      %1255 = vmatpush2.msra.mxu0 0.0
      %1256 = vmatprep.subr.mxu0 0.0
      %1257 = vmatpush2.msra.mxu0 0.0
      %1258 = vmatprep.subr.mxu0 0.0
      %1259 = vmatpush2.msra.mxu0 0.0
      %1260 = vmatprep.subr.mxu0 0.0
      %1261 = vmatpush2.msra.mxu0 0.0
      %1262 = vmatprep.subr.mxu0 0.0
      %1263 = vmatpush2.msra.mxu0 0.0
      %1264 = vmatprep.subr.mxu0 0.0
      %1265 = vmatpush2.msra.mxu0 0.0
      %1266 = vmatprep.subr.mxu0 0.0
      %1267 = vmatpush2.msra.mxu0 0.0
      %1268 = vmatprep.subr.mxu0 0.0
      %1269 = vmatpush2.msra.mxu0 0.0
      %1270 = vmatprep.subr.mxu0 0.0
      %1271 = vmatpush2.msra.mxu0 0.0
      %1272 = vmatprep.subr.mxu0 0.0
      %1273 = vmatpush2.msra.mxu0 0.0
      %1274 = vmatprep.subr.mxu0 0.0
      %1275 = vmatpush2.msra.mxu0 0.0
      %1276 = vmatprep.subr.mxu0 0.0
      %1277 = vmatpush2.msra.mxu0 0.0
      %1278 = vmatprep.mubr.f32.mxu0 0.0
      %1279 = vmatmul.mubr.f32.gmra.mxu0 %v1191
      %v1280 = vpop.f32.mrf.mxu0
      %v1281 = vadd.f32 0.0, %v1280
      %v1282 = vpop.f32.mrf.mxu0
      %1283 = vmatprep.mubr.f32.mxu0 0.0
      %1284 = vmatmul.mubr.f32.gmra.mxu0 %v1194
      %v1285 = vpop.f32.mrf.mxu0
      %v1286 = vadd.f32 0.0, %v1285
      %v1287 = vpop.f32.mrf.mxu0
      %1288 = vmatprep.mubr.f32.mxu0 0.0
      %1289 = vmatmul.mubr.f32.gmra.mxu0 %v1197
      %v1290 = vpop.f32.mrf.mxu0
      %v1291 = vadd.f32 0.0, %v1290
      %v1292 = vpop.f32.mrf.mxu0
      %1293 = vmatprep.mubr.f32.mxu0 0.0
      %1294 = vmatmul.mubr.f32.gmra.mxu0 %v1200
      %v1295 = vpop.f32.mrf.mxu0
      %v1296 = vadd.f32 0.0, %v1295
      %v1297 = vpop.f32.mrf.mxu0
      %1298 = vmatprep.mubr.f32.mxu0 0.0
      %1299 = vmatmul.mubr.f32.gmra.mxu0 %v1203
      %v1300 = vpop.f32.mrf.mxu0
      %v1301 = vadd.f32 0.0, %v1300
      %v1302 = vpop.f32.mrf.mxu0
      %1303 = vmatprep.mubr.f32.mxu0 0.0
      %1304 = vmatmul.mubr.f32.gmra.mxu0 %v1206
      %v1305 = vpop.f32.mrf.mxu0
      %v1306 = vadd.f32 0.0, %v1305
      %v1307 = vpop.f32.mrf.mxu0
      %1308 = vmatprep.mubr.f32.mxu0 0.0
      %1309 = vmatmul.mubr.f32.gmra.mxu0 %v1209
      %v1310 = vpop.f32.mrf.mxu0
      %v1311 = vadd.f32 0.0, %v1310
      %v1312 = vpop.f32.mrf.mxu0
      %1313 = vdwg.mxu0
      %v1315 = vsel %vm1189, %v1147, 0
      %v1318 = vsel %vm1189, %v1148, 0
      %v1321 = vsel %vm1189, %v1149, 0
      %v1324 = vsel %vm1189, %v1150, 0
      %v1327 = vsel %vm1189, %v1151, 0
      %v1330 = vsel %vm1189, %v1152, 0
      %v1333 = vsel %vm1189, %v1153, 0
      %v1335 = vsel %vm1211, %v729, 0
      %1337 = vmatprep.subr.mxu0 0.0
      %1338 = vmatpush1.msra.mxu0 0.0
      %1339 = vmatprep.subr.mxu0 0.0
      %1340 = vmatpush1.msra.mxu0 0.0
      %1341 = vmatprep.subr.mxu0 0.0
      %1342 = vmatpush1.msra.mxu0 0.0
      %1343 = vmatprep.subr.mxu0 0.0
      %1344 = vmatpush1.msra.mxu0 0.0
      %1345 = vmatprep.subr.mxu0 0.0
      %1346 = vmatpush1.msra.mxu0 0.0
      %1347 = vmatprep.subr.mxu0 0.0
      %1348 = vmatpush1.msra.mxu0 0.0
      %1349 = vmatprep.subr.mxu0 0.0
      %1350 = vmatpush1.msra.mxu0 0.0
      %1351 = vmatprep.subr.mxu0 0.0
      %1352 = vmatpush1.msra.mxu0 0.0
      %1353 = vmatprep.subr.mxu0 0.0
      %1354 = vmatpush1.msra.mxu0 0.0
      %1355 = vmatprep.subr.mxu0 0.0
      %1356 = vmatpush1.msra.mxu0 %v1335
      %1357 = vmatprep.subr.mxu0 0.0
      %1358 = vmatpush1.msra.mxu0 %v723
      %1359 = vmatprep.subr.mxu0 0.0
      %1360 = vmatpush1.msra.mxu0 %v717
      %1361 = vmatprep.subr.mxu0 0.0
      %1362 = vmatpush1.msra.mxu0 %v711
      %1363 = vmatprep.subr.mxu0 0.0
      %1364 = vmatpush1.msra.mxu0 %v705
      %1365 = vmatprep.subr.mxu0 0.0
      %1366 = vmatpush1.msra.mxu0 %v699
      %1367 = vmatprep.subr.mxu0 0.0
      %1368 = vmatpush1.msra.mxu0 %v693
      %1369 = vmatprep.subr.mxu0 0.0
      %1370 = vmatpush2.msra.mxu0 0.0
      %1371 = vmatprep.subr.mxu0 0.0
      %1372 = vmatpush2.msra.mxu0 0.0
      %1373 = vmatprep.subr.mxu0 0.0
      %1374 = vmatpush2.msra.mxu0 0.0
      %1375 = vmatprep.subr.mxu0 0.0
      %1376 = vmatpush2.msra.mxu0 0.0
      %1377 = vmatprep.subr.mxu0 0.0
      %1378 = vmatpush2.msra.mxu0 0.0
      %1379 = vmatprep.subr.mxu0 0.0
      %1380 = vmatpush2.msra.mxu0 0.0
      %1381 = vmatprep.subr.mxu0 0.0
      %1382 = vmatpush2.msra.mxu0 0.0
      %1383 = vmatprep.subr.mxu0 0.0
      %1384 = vmatpush2.msra.mxu0 0.0
      %1385 = vmatprep.subr.mxu0 0.0
      %1386 = vmatpush2.msra.mxu0 0.0
      %1387 = vmatprep.subr.mxu0 0.0
      %1388 = vmatpush2.msra.mxu0 0.0
      %1389 = vmatprep.subr.mxu0 0.0
      %1390 = vmatpush2.msra.mxu0 0.0
      %1391 = vmatprep.subr.mxu0 0.0
      %1392 = vmatpush2.msra.mxu0 0.0
      %1393 = vmatprep.subr.mxu0 0.0
      %1394 = vmatpush2.msra.mxu0 0.0
      %1395 = vmatprep.subr.mxu0 0.0
      %1396 = vmatpush2.msra.mxu0 0.0
      %1397 = vmatprep.subr.mxu0 0.0
      %1398 = vmatpush2.msra.mxu0 0.0
      %1399 = vmatprep.subr.mxu0 0.0
      %1400 = vmatpush2.msra.mxu0 0.0
      %1401 = vmatprep.mubr.f32.mxu0 0.0
      %1402 = vmatmul.mubr.f32.gmra.mxu0 %v1315
      %v1403 = vpop.f32.mrf.mxu0
      %v1404 = vadd.f32 %v1281, %v1403
      %v1405 = vpop.f32.mrf.mxu0
      %1406 = vmatprep.mubr.f32.mxu0 0.0
      %1407 = vmatmul.mubr.f32.gmra.mxu0 %v1318
      %v1408 = vpop.f32.mrf.mxu0
      %v1409 = vadd.f32 %v1286, %v1408
      %v1410 = vpop.f32.mrf.mxu0
      %1411 = vmatprep.mubr.f32.mxu0 0.0
      %1412 = vmatmul.mubr.f32.gmra.mxu0 %v1321
      %v1413 = vpop.f32.mrf.mxu0
      %v1414 = vadd.f32 %v1291, %v1413
      %v1415 = vpop.f32.mrf.mxu0
      %1416 = vmatprep.mubr.f32.mxu0 0.0
      %1417 = vmatmul.mubr.f32.gmra.mxu0 %v1324
      %v1418 = vpop.f32.mrf.mxu0
      %v1419 = vadd.f32 %v1296, %v1418
      %v1420 = vpop.f32.mrf.mxu0
      %1421 = vmatprep.mubr.f32.mxu0 0.0
      %1422 = vmatmul.mubr.f32.gmra.mxu0 %v1327
      %v1423 = vpop.f32.mrf.mxu0
      %v1424 = vadd.f32 %v1301, %v1423
      %v1425 = vpop.f32.mrf.mxu0
      %1426 = vmatprep.mubr.f32.mxu0 0.0
      %1427 = vmatmul.mubr.f32.gmra.mxu0 %v1330
      %v1428 = vpop.f32.mrf.mxu0
      %v1429 = vadd.f32 %v1306, %v1428
      %v1430 = vpop.f32.mrf.mxu0
      %1431 = vmatprep.mubr.f32.mxu0 0.0
      %1432 = vmatmul.mubr.f32.gmra.mxu0 %v1333
      %v1433 = vpop.f32.mrf.mxu0
      %v1434 = vadd.f32 %v1311, %v1433
      %v1435 = vpop.f32.mrf.mxu0
      %1436 = vdwg.mxu0
      %s1437 = scalar_lea.vmem %s2, 112
      %v1438 = vld [vmem:[%s1437] sm:$0xff]
      %v1439 = vld [vmem:[%s1437 + $0x8] sm:$0xff]
      %v1440 = vld [vmem:[%s1437 + $0x10] sm:$0xff]
      %v1441 = vld [vmem:[%s1437 + $0x18] sm:$0xff]
      %v1442 = vld [vmem:[%s1437 + $0x20] sm:$0xff]
      %v1443 = vld [vmem:[%s1437 + $0x28] sm:$0xff]
      %v1444 = vld [vmem:[%s1437 + $0x30] sm:$0x1]
      %v1446 = vsel %vm1189, %v1438, 0
      %v1449 = vsel %vm1189, %v1439, 0
      %v1452 = vsel %vm1189, %v1440, 0
      %v1455 = vsel %vm1189, %v1441, 0
      %v1458 = vsel %vm1189, %v1442, 0
      %v1461 = vsel %vm1189, %v1443, 0
      %v1464 = vsel %vm1189, %v1444, 0
      %v1467 = vsel %vm1211, %v731, 0
      %1469 = vmatprep.subr.mxu0 0.0
      %1470 = vmatpush1.msra.mxu0 0.0
      %1471 = vmatprep.subr.mxu0 0.0
      %1472 = vmatpush1.msra.mxu0 0.0
      %1473 = vmatprep.subr.mxu0 0.0
      %1474 = vmatpush1.msra.mxu0 0.0
      %1475 = vmatprep.subr.mxu0 0.0
      %1476 = vmatpush1.msra.mxu0 0.0
      %1477 = vmatprep.subr.mxu0 0.0
      %1478 = vmatpush1.msra.mxu0 0.0
      %1479 = vmatprep.subr.mxu0 0.0
      %1480 = vmatpush1.msra.mxu0 0.0
      %1481 = vmatprep.subr.mxu0 0.0
      %1482 = vmatpush1.msra.mxu0 0.0
      %1483 = vmatprep.subr.mxu0 0.0
      %1484 = vmatpush1.msra.mxu0 0.0
      %1485 = vmatprep.subr.mxu0 0.0
      %1486 = vmatpush1.msra.mxu0 0.0
      %1487 = vmatprep.subr.mxu0 0.0
      %1488 = vmatpush1.msra.mxu0 %v1467
      %1489 = vmatprep.subr.mxu0 0.0
      %1490 = vmatpush1.msra.mxu0 %v725
      %1491 = vmatprep.subr.mxu0 0.0
      %1492 = vmatpush1.msra.mxu0 %v719
      %1493 = vmatprep.subr.mxu0 0.0
      %1494 = vmatpush1.msra.mxu0 %v713
      %1495 = vmatprep.subr.mxu0 0.0
      %1496 = vmatpush1.msra.mxu0 %v707
      %1497 = vmatprep.subr.mxu0 0.0
      %1498 = vmatpush1.msra.mxu0 %v701
      %1499 = vmatprep.subr.mxu0 0.0
      %1500 = vmatpush1.msra.mxu0 %v695
      %1501 = vmatprep.subr.mxu0 0.0
      %1502 = vmatpush2.msra.mxu0 0.0
      %1503 = vmatprep.subr.mxu0 0.0
      %1504 = vmatpush2.msra.mxu0 0.0
      %1505 = vmatprep.subr.mxu0 0.0
      %1506 = vmatpush2.msra.mxu0 0.0
      %1507 = vmatprep.subr.mxu0 0.0
      %1508 = vmatpush2.msra.mxu0 0.0
      %1509 = vmatprep.subr.mxu0 0.0
      %1510 = vmatpush2.msra.mxu0 0.0
      %1511 = vmatprep.subr.mxu0 0.0
      %1512 = vmatpush2.msra.mxu0 0.0
      %1513 = vmatprep.subr.mxu0 0.0
      %1514 = vmatpush2.msra.mxu0 0.0
      %1515 = vmatprep.subr.mxu0 0.0
      %1516 = vmatpush2.msra.mxu0 0.0
      %1517 = vmatprep.subr.mxu0 0.0
      %1518 = vmatpush2.msra.mxu0 0.0
      %1519 = vmatprep.subr.mxu0 0.0
      %1520 = vmatpush2.msra.mxu0 0.0
      %1521 = vmatprep.subr.mxu0 0.0
      %1522 = vmatpush2.msra.mxu0 0.0
      %1523 = vmatprep.subr.mxu0 0.0
      %1524 = vmatpush2.msra.mxu0 0.0
      %1525 = vmatprep.subr.mxu0 0.0
      %1526 = vmatpush2.msra.mxu0 0.0
      %1527 = vmatprep.subr.mxu0 0.0
      %1528 = vmatpush2.msra.mxu0 0.0
      %1529 = vmatprep.subr.mxu0 0.0
      %1530 = vmatpush2.msra.mxu0 0.0
      %1531 = vmatprep.subr.mxu0 0.0
      %1532 = vmatpush2.msra.mxu0 0.0
      %1533 = vmatprep.mubr.f32.mxu0 0.0
      %1534 = vmatmul.mubr.f32.gmra.mxu0 %v1446
      %v1535 = vpop.f32.mrf.mxu0
      %v1536 = vadd.f32 0.0, %v1535
      %v1537 = vpop.f32.mrf.mxu0
      %1538 = vmatprep.mubr.f32.mxu0 0.0
      %1539 = vmatmul.mubr.f32.gmra.mxu0 %v1449
      %v1540 = vpop.f32.mrf.mxu0
      %v1541 = vadd.f32 0.0, %v1540
      %v1542 = vpop.f32.mrf.mxu0
      %1543 = vmatprep.mubr.f32.mxu0 0.0
      %1544 = vmatmul.mubr.f32.gmra.mxu0 %v1452
      %v1545 = vpop.f32.mrf.mxu0
      %v1546 = vadd.f32 0.0, %v1545
      %v1547 = vpop.f32.mrf.mxu0
      %1548 = vmatprep.mubr.f32.mxu0 0.0
      %1549 = vmatmul.mubr.f32.gmra.mxu0 %v1455
      %v1550 = vpop.f32.mrf.mxu0
      %v1551 = vadd.f32 0.0, %v1550
      %v1552 = vpop.f32.mrf.mxu0
      %1553 = vmatprep.mubr.f32.mxu0 0.0
      %1554 = vmatmul.mubr.f32.gmra.mxu0 %v1458
      %v1555 = vpop.f32.mrf.mxu0
      %v1556 = vadd.f32 0.0, %v1555
      %v1557 = vpop.f32.mrf.mxu0
      %1558 = vmatprep.mubr.f32.mxu0 0.0
      %1559 = vmatmul.mubr.f32.gmra.mxu0 %v1461
      %v1560 = vpop.f32.mrf.mxu0
      %v1561 = vadd.f32 0.0, %v1560
      %v1562 = vpop.f32.mrf.mxu0
      %1563 = vmatprep.mubr.f32.mxu0 0.0
      %1564 = vmatmul.mubr.f32.gmra.mxu0 %v1464
      %v1565 = vpop.f32.mrf.mxu0
      %v1566 = vadd.f32 0.0, %v1565
      %v1567 = vpop.f32.mrf.mxu0
      %1568 = vdwg.mxu0
      %v1569 = vadd.f32 %v1404, %v1536
      %v1570 = vadd.f32 %v1409, %v1541
      %v1571 = vadd.f32 %v1414, %v1546
      %v1572 = vadd.f32 %v1419, %v1551
      %v1573 = vadd.f32 %v1424, %v1556
      %v1574 = vadd.f32 %v1429, %v1561
      %v1575 = vadd.f32 %v1434, %v1566
      %s1576 = scalar_lea.vmem %s2, 168
      %v1577 = vld [vmem:[%s1576] sm:$0xff]
      %v1578 = vld [vmem:[%s1576 + $0x8] sm:$0xff]
      %v1579 = vld [vmem:[%s1576 + $0x10] sm:$0xff]
      %v1580 = vld [vmem:[%s1576 + $0x18] sm:$0xff]
      %v1581 = vld [vmem:[%s1576 + $0x20] sm:$0xff]
      %v1582 = vld [vmem:[%s1576 + $0x28] sm:$0xff]
      %v1583 = vld [vmem:[%s1576 + $0x30] sm:$0x1]
      %1590 = vrot.lane.b32.xlu0 %v695, 64
      %v1591 = vpop.permute.xlu0 %1590
      %1592 = vrot.lane.b32.xlu0 %v701, 64
      %v1593 = vpop.permute.xlu0 %1592
      %1594 = vrot.lane.b32.xlu0 %v707, 64
      %v1595 = vpop.permute.xlu0 %1594
      %1596 = vrot.lane.b32.xlu0 %v713, 64
      %v1597 = vpop.permute.xlu0 %1596
      %1598 = vrot.lane.b32.xlu0 %v719, 64
      %v1599 = vpop.permute.xlu0 %1598
      %1600 = vrot.lane.b32.xlu0 %v725, 64
      %v1601 = vpop.permute.xlu0 %1600
      %1602 = vrot.lane.b32.xlu0 %v731, 64
      %v1603 = vpop.permute.xlu0 %1602
      %v1611 = vsel %vm1189, %v1577, 0
      %v1614 = vsel %vm1189, %v1578, 0
      %v1617 = vsel %vm1189, %v1579, 0
      %v1620 = vsel %vm1189, %v1580, 0
      %v1623 = vsel %vm1189, %v1581, 0
      %v1626 = vsel %vm1189, %v1582, 0
      %v1629 = vsel %vm1189, %v1583, 0
      %v1631 = vsel %vm1211, %v1603, 0
      %1633 = vmatprep.subr.mxu0 0.0
      %1634 = vmatpush1.msra.mxu0 0.0
      %1635 = vmatprep.subr.mxu0 0.0
      %1636 = vmatpush1.msra.mxu0 0.0
      %1637 = vmatprep.subr.mxu0 0.0
      %1638 = vmatpush1.msra.mxu0 0.0
      %1639 = vmatprep.subr.mxu0 0.0
      %1640 = vmatpush1.msra.mxu0 0.0
      %1641 = vmatprep.subr.mxu0 0.0
      %1642 = vmatpush1.msra.mxu0 0.0
      %1643 = vmatprep.subr.mxu0 0.0
      %1644 = vmatpush1.msra.mxu0 0.0
      %1645 = vmatprep.subr.mxu0 0.0
      %1646 = vmatpush1.msra.mxu0 0.0
      %1647 = vmatprep.subr.mxu0 0.0
      %1648 = vmatpush1.msra.mxu0 0.0
      %1649 = vmatprep.subr.mxu0 0.0
      %1650 = vmatpush1.msra.mxu0 0.0
      %1651 = vmatprep.subr.mxu0 0.0
      %1652 = vmatpush1.msra.mxu0 %v1631
      %1653 = vmatprep.subr.mxu0 0.0
      %1654 = vmatpush1.msra.mxu0 %v1601
      %1655 = vmatprep.subr.mxu0 0.0
      %1656 = vmatpush1.msra.mxu0 %v1599
      %1657 = vmatprep.subr.mxu0 0.0
      %1658 = vmatpush1.msra.mxu0 %v1597
      %1659 = vmatprep.subr.mxu0 0.0
      %1660 = vmatpush1.msra.mxu0 %v1595
      %1661 = vmatprep.subr.mxu0 0.0
      %1662 = vmatpush1.msra.mxu0 %v1593
      %1663 = vmatprep.subr.mxu0 0.0
      %1664 = vmatpush1.msra.mxu0 %v1591
      %1665 = vmatprep.subr.mxu0 0.0
      %1666 = vmatpush2.msra.mxu0 0.0
      %1667 = vmatprep.subr.mxu0 0.0
      %1668 = vmatpush2.msra.mxu0 0.0
      %1669 = vmatprep.subr.mxu0 0.0
      %1670 = vmatpush2.msra.mxu0 0.0
      %1671 = vmatprep.subr.mxu0 0.0
      %1672 = vmatpush2.msra.mxu0 0.0
      %1673 = vmatprep.subr.mxu0 0.0
      %1674 = vmatpush2.msra.mxu0 0.0
      %1675 = vmatprep.subr.mxu0 0.0
      %1676 = vmatpush2.msra.mxu0 0.0
      %1677 = vmatprep.subr.mxu0 0.0
      %1678 = vmatpush2.msra.mxu0 0.0
      %1679 = vmatprep.subr.mxu0 0.0
      %1680 = vmatpush2.msra.mxu0 0.0
      %1681 = vmatprep.subr.mxu0 0.0
      %1682 = vmatpush2.msra.mxu0 0.0
      %1683 = vmatprep.subr.mxu0 0.0
      %1684 = vmatpush2.msra.mxu0 0.0
      %1685 = vmatprep.subr.mxu0 0.0
      %1686 = vmatpush2.msra.mxu0 0.0
      %1687 = vmatprep.subr.mxu0 0.0
      %1688 = vmatpush2.msra.mxu0 0.0
      %1689 = vmatprep.subr.mxu0 0.0
      %1690 = vmatpush2.msra.mxu0 0.0
      %1691 = vmatprep.subr.mxu0 0.0
      %1692 = vmatpush2.msra.mxu0 0.0
      %1693 = vmatprep.subr.mxu0 0.0
      %1694 = vmatpush2.msra.mxu0 0.0
      %1695 = vmatprep.subr.mxu0 0.0
      %1696 = vmatpush2.msra.mxu0 0.0
      %1697 = vmatprep.mubr.f32.mxu0 0.0
      %1698 = vmatmul.mubr.f32.gmra.mxu0 %v1611
      %v1699 = vpop.f32.mrf.mxu0
      %v1700 = vadd.f32 0.0, %v1699
      %v1701 = vpop.f32.mrf.mxu0
      %1702 = vmatprep.mubr.f32.mxu0 0.0
      %1703 = vmatmul.mubr.f32.gmra.mxu0 %v1614
      %v1704 = vpop.f32.mrf.mxu0
      %v1705 = vadd.f32 0.0, %v1704
      %v1706 = vpop.f32.mrf.mxu0
      %1707 = vmatprep.mubr.f32.mxu0 0.0
      %1708 = vmatmul.mubr.f32.gmra.mxu0 %v1617
      %v1709 = vpop.f32.mrf.mxu0
      %v1710 = vadd.f32 0.0, %v1709
      %v1711 = vpop.f32.mrf.mxu0
      %1712 = vmatprep.mubr.f32.mxu0 0.0
      %1713 = vmatmul.mubr.f32.gmra.mxu0 %v1620
      %v1714 = vpop.f32.mrf.mxu0
      %v1715 = vadd.f32 0.0, %v1714
      %v1716 = vpop.f32.mrf.mxu0
      %1717 = vmatprep.mubr.f32.mxu0 0.0
      %1718 = vmatmul.mubr.f32.gmra.mxu0 %v1623
      %v1719 = vpop.f32.mrf.mxu0
      %v1720 = vadd.f32 0.0, %v1719
      %v1721 = vpop.f32.mrf.mxu0
      %1722 = vmatprep.mubr.f32.mxu0 0.0
      %1723 = vmatmul.mubr.f32.gmra.mxu0 %v1626
      %v1724 = vpop.f32.mrf.mxu0
      %v1725 = vadd.f32 0.0, %v1724
      %v1726 = vpop.f32.mrf.mxu0
      %1727 = vmatprep.mubr.f32.mxu0 0.0
      %1728 = vmatmul.mubr.f32.gmra.mxu0 %v1629
      %v1729 = vpop.f32.mrf.mxu0
      %v1730 = vadd.f32 0.0, %v1729
      %v1731 = vpop.f32.mrf.mxu0
      %1732 = vdwg.mxu0
      %v1733 = vadd.f32 %v1569, %v1700
      %v1734 = vadd.f32 %v1570, %v1705
      %v1735 = vadd.f32 %v1571, %v1710
      %v1736 = vadd.f32 %v1572, %v1715
      %v1737 = vadd.f32 %v1573, %v1720
      %v1738 = vadd.f32 %v1574, %v1725
      %v1739 = vadd.f32 %v1575, %v1730
      %s1740 = scalar_lea.vmem %s2, 224
      %v1741 = vld [vmem:[%s1740] sm:$0xff]
      %v1742 = vld [vmem:[%s1740 + $0x8] sm:$0xff]
      %v1743 = vld [vmem:[%s1740 + $0x10] sm:$0xff]
      %v1744 = vld [vmem:[%s1740 + $0x18] sm:$0xff]
      %v1745 = vld [vmem:[%s1740 + $0x20] sm:$0xff]
      %v1746 = vld [vmem:[%s1740 + $0x28] sm:$0xff]
      %v1747 = vld [vmem:[%s1740 + $0x30] sm:$0x1]
      %v1749 = vsel %vm1189, %v1741, 0
      %v1752 = vsel %vm1189, %v1742, 0
      %v1755 = vsel %vm1189, %v1743, 0
      %v1758 = vsel %vm1189, %v1744, 0
      %v1761 = vsel %vm1189, %v1745, 0
      %v1764 = vsel %vm1189, %v1746, 0
      %v1767 = vsel %vm1189, %v1747, 0
      %v1770 = vsel %vm1211, %v943, 0
      %1772 = vmatprep.subr.mxu0 0.0
      %1773 = vmatpush1.msra.mxu0 0.0
      %1774 = vmatprep.subr.mxu0 0.0
      %1775 = vmatpush1.msra.mxu0 0.0
      %1776 = vmatprep.subr.mxu0 0.0
      %1777 = vmatpush1.msra.mxu0 0.0
      %1778 = vmatprep.subr.mxu0 0.0
      %1779 = vmatpush1.msra.mxu0 0.0
      %1780 = vmatprep.subr.mxu0 0.0
      %1781 = vmatpush1.msra.mxu0 0.0
      %1782 = vmatprep.subr.mxu0 0.0
      %1783 = vmatpush1.msra.mxu0 0.0
      %1784 = vmatprep.subr.mxu0 0.0
      %1785 = vmatpush1.msra.mxu0 0.0
      %1786 = vmatprep.subr.mxu0 0.0
      %1787 = vmatpush1.msra.mxu0 0.0
      %1788 = vmatprep.subr.mxu0 0.0
      %1789 = vmatpush1.msra.mxu0 0.0
      %1790 = vmatprep.subr.mxu0 0.0
      %1791 = vmatpush1.msra.mxu0 %v1770
      %1792 = vmatprep.subr.mxu0 0.0
      %1793 = vmatpush1.msra.mxu0 %v937
      %1794 = vmatprep.subr.mxu0 0.0
      %1795 = vmatpush1.msra.mxu0 %v931
      %1796 = vmatprep.subr.mxu0 0.0
      %1797 = vmatpush1.msra.mxu0 %v925
      %1798 = vmatprep.subr.mxu0 0.0
      %1799 = vmatpush1.msra.mxu0 %v919
      %1800 = vmatprep.subr.mxu0 0.0
      %1801 = vmatpush1.msra.mxu0 %v913
      %1802 = vmatprep.subr.mxu0 0.0
      %1803 = vmatpush1.msra.mxu0 %v907
      %1804 = vmatprep.subr.mxu0 0.0
      %1805 = vmatpush2.msra.mxu0 0.0
      %1806 = vmatprep.subr.mxu0 0.0
      %1807 = vmatpush2.msra.mxu0 0.0
      %1808 = vmatprep.subr.mxu0 0.0
      %1809 = vmatpush2.msra.mxu0 0.0
      %1810 = vmatprep.subr.mxu0 0.0
      %1811 = vmatpush2.msra.mxu0 0.0
      %1812 = vmatprep.subr.mxu0 0.0
      %1813 = vmatpush2.msra.mxu0 0.0
      %1814 = vmatprep.subr.mxu0 0.0
      %1815 = vmatpush2.msra.mxu0 0.0
      %1816 = vmatprep.subr.mxu0 0.0
      %1817 = vmatpush2.msra.mxu0 0.0
      %1818 = vmatprep.subr.mxu0 0.0
      %1819 = vmatpush2.msra.mxu0 0.0
      %1820 = vmatprep.subr.mxu0 0.0
      %1821 = vmatpush2.msra.mxu0 0.0
      %1822 = vmatprep.subr.mxu0 0.0
      %1823 = vmatpush2.msra.mxu0 0.0
      %1824 = vmatprep.subr.mxu0 0.0
      %1825 = vmatpush2.msra.mxu0 0.0
      %1826 = vmatprep.subr.mxu0 0.0
      %1827 = vmatpush2.msra.mxu0 0.0
      %1828 = vmatprep.subr.mxu0 0.0
      %1829 = vmatpush2.msra.mxu0 0.0
      %1830 = vmatprep.subr.mxu0 0.0
      %1831 = vmatpush2.msra.mxu0 0.0
      %1832 = vmatprep.subr.mxu0 0.0
      %1833 = vmatpush2.msra.mxu0 0.0
      %1834 = vmatprep.subr.mxu0 0.0
      %1835 = vmatpush2.msra.mxu0 0.0
      %1836 = vmatprep.mubr.f32.mxu0 0.0
      %1837 = vmatmul.mubr.f32.gmra.mxu0 %v1749
      %v1838 = vpop.f32.mrf.mxu0
      %v1839 = vadd.f32 0.0, %v1838
      %v1840 = vpop.f32.mrf.mxu0
      %1841 = vmatprep.mubr.f32.mxu0 0.0
      %1842 = vmatmul.mubr.f32.gmra.mxu0 %v1752
      %v1843 = vpop.f32.mrf.mxu0
      %v1844 = vadd.f32 0.0, %v1843
      %v1845 = vpop.f32.mrf.mxu0
      %1846 = vmatprep.mubr.f32.mxu0 0.0
      %1847 = vmatmul.mubr.f32.gmra.mxu0 %v1755
      %v1848 = vpop.f32.mrf.mxu0
      %v1849 = vadd.f32 0.0, %v1848
      %v1850 = vpop.f32.mrf.mxu0
      %1851 = vmatprep.mubr.f32.mxu0 0.0
      %1852 = vmatmul.mubr.f32.gmra.mxu0 %v1758
      %v1853 = vpop.f32.mrf.mxu0
      %v1854 = vadd.f32 0.0, %v1853
      %v1855 = vpop.f32.mrf.mxu0
      %1856 = vmatprep.mubr.f32.mxu0 0.0
      %1857 = vmatmul.mubr.f32.gmra.mxu0 %v1761
      %v1858 = vpop.f32.mrf.mxu0
      %v1859 = vadd.f32 0.0, %v1858
      %v1860 = vpop.f32.mrf.mxu0
      %1861 = vmatprep.mubr.f32.mxu0 0.0
      %1862 = vmatmul.mubr.f32.gmra.mxu0 %v1764
      %v1863 = vpop.f32.mrf.mxu0
      %v1864 = vadd.f32 0.0, %v1863
      %v1865 = vpop.f32.mrf.mxu0
      %1866 = vmatprep.mubr.f32.mxu0 0.0
      %1867 = vmatmul.mubr.f32.gmra.mxu0 %v1767
      %v1868 = vpop.f32.mrf.mxu0
      %v1869 = vadd.f32 0.0, %v1868
      %v1870 = vpop.f32.mrf.mxu0
      %1871 = vdwg.mxu0
      %v1872 = vadd.f32 %v1733, %v1839
      %v1873 = vadd.f32 %v1734, %v1844
      %v1874 = vadd.f32 %v1735, %v1849
      %v1875 = vadd.f32 %v1736, %v1854
      %v1876 = vadd.f32 %v1737, %v1859
      %v1877 = vadd.f32 %v1738, %v1864
      %v1878 = vadd.f32 %v1739, %v1869
      %s1879 = scalar_lea.vmem %s2, 280
      %v1880 = vld [vmem:[%s1879] sm:$0xff]
      %v1881 = vld [vmem:[%s1879 + $0x8] sm:$0xff]
      %v1882 = vld [vmem:[%s1879 + $0x10] sm:$0xff]
      %v1883 = vld [vmem:[%s1879 + $0x18] sm:$0xff]
      %v1884 = vld [vmem:[%s1879 + $0x20] sm:$0xff]
      %v1885 = vld [vmem:[%s1879 + $0x28] sm:$0xff]
      %v1886 = vld [vmem:[%s1879 + $0x30] sm:$0x1]
      %1893 = vrot.lane.b32.xlu0 %v907, 64
      %v1894 = vpop.permute.xlu0 %1893
      %1895 = vrot.lane.b32.xlu0 %v913, 64
      %v1896 = vpop.permute.xlu0 %1895
      %1897 = vrot.lane.b32.xlu0 %v919, 64
      %v1898 = vpop.permute.xlu0 %1897
      %1899 = vrot.lane.b32.xlu0 %v925, 64
      %v1900 = vpop.permute.xlu0 %1899
      %1901 = vrot.lane.b32.xlu0 %v931, 64
      %v1902 = vpop.permute.xlu0 %1901
      %1903 = vrot.lane.b32.xlu0 %v937, 64
      %v1904 = vpop.permute.xlu0 %1903
      %1905 = vrot.lane.b32.xlu0 %v943, 64
      %v1906 = vpop.permute.xlu0 %1905
      %v1914 = vsel %vm1189, %v1880, 0
      %v1917 = vsel %vm1189, %v1881, 0
      %v1920 = vsel %vm1189, %v1882, 0
      %v1923 = vsel %vm1189, %v1883, 0
      %v1926 = vsel %vm1189, %v1884, 0
      %v1929 = vsel %vm1189, %v1885, 0
      %v1932 = vsel %vm1189, %v1886, 0
      %v1934 = vsel %vm1211, %v1906, 0
      %1936 = vmatprep.subr.mxu0 0.0
      %1937 = vmatpush1.msra.mxu0 0.0
      %1938 = vmatprep.subr.mxu0 0.0
      %1939 = vmatpush1.msra.mxu0 0.0
      %1940 = vmatprep.subr.mxu0 0.0
      %1941 = vmatpush1.msra.mxu0 0.0
      %1942 = vmatprep.subr.mxu0 0.0
      %1943 = vmatpush1.msra.mxu0 0.0
      %1944 = vmatprep.subr.mxu0 0.0
      %1945 = vmatpush1.msra.mxu0 0.0
      %1946 = vmatprep.subr.mxu0 0.0
      %1947 = vmatpush1.msra.mxu0 0.0
      %1948 = vmatprep.subr.mxu0 0.0
      %1949 = vmatpush1.msra.mxu0 0.0
      %1950 = vmatprep.subr.mxu0 0.0
      %1951 = vmatpush1.msra.mxu0 0.0
      %1952 = vmatprep.subr.mxu0 0.0
      %1953 = vmatpush1.msra.mxu0 0.0
      %1954 = vmatprep.subr.mxu0 0.0
      %1955 = vmatpush1.msra.mxu0 %v1934
      %1956 = vmatprep.subr.mxu0 0.0
      %1957 = vmatpush1.msra.mxu0 %v1904
      %1958 = vmatprep.subr.mxu0 0.0
      %1959 = vmatpush1.msra.mxu0 %v1902
      %1960 = vmatprep.subr.mxu0 0.0
      %1961 = vmatpush1.msra.mxu0 %v1900
      %1962 = vmatprep.subr.mxu0 0.0
      %1963 = vmatpush1.msra.mxu0 %v1898
      %1964 = vmatprep.subr.mxu0 0.0
      %1965 = vmatpush1.msra.mxu0 %v1896
      %1966 = vmatprep.subr.mxu0 0.0
      %1967 = vmatpush1.msra.mxu0 %v1894
      %1968 = vmatprep.subr.mxu0 0.0
      %1969 = vmatpush2.msra.mxu0 0.0
      %1970 = vmatprep.subr.mxu0 0.0
      %1971 = vmatpush2.msra.mxu0 0.0
      %1972 = vmatprep.subr.mxu0 0.0
      %1973 = vmatpush2.msra.mxu0 0.0
      %1974 = vmatprep.subr.mxu0 0.0
      %1975 = vmatpush2.msra.mxu0 0.0
      %1976 = vmatprep.subr.mxu0 0.0
      %1977 = vmatpush2.msra.mxu0 0.0
      %1978 = vmatprep.subr.mxu0 0.0
      %1979 = vmatpush2.msra.mxu0 0.0
      %1980 = vmatprep.subr.mxu0 0.0
      %1981 = vmatpush2.msra.mxu0 0.0
      %1982 = vmatprep.subr.mxu0 0.0
      %1983 = vmatpush2.msra.mxu0 0.0
      %1984 = vmatprep.subr.mxu0 0.0
      %1985 = vmatpush2.msra.mxu0 0.0
      %1986 = vmatprep.subr.mxu0 0.0
      %1987 = vmatpush2.msra.mxu0 0.0
      %1988 = vmatprep.subr.mxu0 0.0
      %1989 = vmatpush2.msra.mxu0 0.0
      %1990 = vmatprep.subr.mxu0 0.0
      %1991 = vmatpush2.msra.mxu0 0.0
      %1992 = vmatprep.subr.mxu0 0.0
      %1993 = vmatpush2.msra.mxu0 0.0
      %1994 = vmatprep.subr.mxu0 0.0
      %1995 = vmatpush2.msra.mxu0 0.0
      %1996 = vmatprep.subr.mxu0 0.0
      %1997 = vmatpush2.msra.mxu0 0.0
      %1998 = vmatprep.subr.mxu0 0.0
      %1999 = vmatpush2.msra.mxu0 0.0
      %2000 = vmatprep.mubr.f32.mxu0 0.0
      %2001 = vmatmul.mubr.f32.gmra.mxu0 %v1914
      %v2002 = vpop.f32.mrf.mxu0
      %v2003 = vadd.f32 0.0, %v2002
      %v2004 = vpop.f32.mrf.mxu0
      %2005 = vmatprep.mubr.f32.mxu0 0.0
      %2006 = vmatmul.mubr.f32.gmra.mxu0 %v1917
      %v2007 = vpop.f32.mrf.mxu0
      %v2008 = vadd.f32 0.0, %v2007
      %v2009 = vpop.f32.mrf.mxu0
      %2010 = vmatprep.mubr.f32.mxu0 0.0
      %2011 = vmatmul.mubr.f32.gmra.mxu0 %v1920
      %v2012 = vpop.f32.mrf.mxu0
      %v2013 = vadd.f32 0.0, %v2012
      %v2014 = vpop.f32.mrf.mxu0
      %2015 = vmatprep.mubr.f32.mxu0 0.0
      %2016 = vmatmul.mubr.f32.gmra.mxu0 %v1923
      %v2017 = vpop.f32.mrf.mxu0
      %v2018 = vadd.f32 0.0, %v2017
      %v2019 = vpop.f32.mrf.mxu0
      %2020 = vmatprep.mubr.f32.mxu0 0.0
      %2021 = vmatmul.mubr.f32.gmra.mxu0 %v1926
      %v2022 = vpop.f32.mrf.mxu0
      %v2023 = vadd.f32 0.0, %v2022
      %v2024 = vpop.f32.mrf.mxu0
      %2025 = vmatprep.mubr.f32.mxu0 0.0
      %2026 = vmatmul.mubr.f32.gmra.mxu0 %v1929
      %v2027 = vpop.f32.mrf.mxu0
      %v2028 = vadd.f32 0.0, %v2027
      %v2029 = vpop.f32.mrf.mxu0
      %2030 = vmatprep.mubr.f32.mxu0 0.0
      %2031 = vmatmul.mubr.f32.gmra.mxu0 %v1932
      %v2032 = vpop.f32.mrf.mxu0
      %v2033 = vadd.f32 0.0, %v2032
      %v2034 = vpop.f32.mrf.mxu0
      %2035 = vdwg.mxu0
      %v2036 = vadd.f32 %v1872, %v2003
      %v2037 = vadd.f32 %v1873, %v2008
      %v2038 = vadd.f32 %v1874, %v2013
      %v2039 = vadd.f32 %v1875, %v2018
      %v2040 = vadd.f32 %v1876, %v2023
      %v2041 = vadd.f32 %v1877, %v2028
      %v2042 = vadd.f32 %v1878, %v2033
      %s2043 = scalar_lea.vmem %s2, 336
      %v2044 = vld [vmem:[%s2043] sm:$0xff]
      %v2045 = vld [vmem:[%s2043 + $0x8] sm:$0xff]
      %v2046 = vld [vmem:[%s2043 + $0x10] sm:$0xff]
      %v2047 = vld [vmem:[%s2043 + $0x18] sm:$0xff]
      %v2048 = vld [vmem:[%s2043 + $0x20] sm:$0xff]
      %v2049 = vld [vmem:[%s2043 + $0x28] sm:$0xff]
      %v2050 = vld [vmem:[%s2043 + $0x30] sm:$0x1]
      %v2052 = vsel %vm1189, %v2044, 0
      %v2055 = vsel %vm1189, %v2045, 0
      %v2058 = vsel %vm1189, %v2046, 0
      %v2061 = vsel %vm1189, %v2047, 0
      %v2064 = vsel %vm1189, %v2048, 0
      %v2067 = vsel %vm1189, %v2049, 0
      %v2070 = vsel %vm1189, %v2050, 0
      %v2073 = vsel %vm1211, %v945, 0
      %2075 = vmatprep.subr.mxu0 0.0
      %2076 = vmatpush1.msra.mxu0 0.0
      %2077 = vmatprep.subr.mxu0 0.0
      %2078 = vmatpush1.msra.mxu0 0.0
      %2079 = vmatprep.subr.mxu0 0.0
      %2080 = vmatpush1.msra.mxu0 0.0
      %2081 = vmatprep.subr.mxu0 0.0
      %2082 = vmatpush1.msra.mxu0 0.0
      %2083 = vmatprep.subr.mxu0 0.0
      %2084 = vmatpush1.msra.mxu0 0.0
      %2085 = vmatprep.subr.mxu0 0.0
      %2086 = vmatpush1.msra.mxu0 0.0
      %2087 = vmatprep.subr.mxu0 0.0
      %2088 = vmatpush1.msra.mxu0 0.0
      %2089 = vmatprep.subr.mxu0 0.0
      %2090 = vmatpush1.msra.mxu0 0.0
      %2091 = vmatprep.subr.mxu0 0.0
      %2092 = vmatpush1.msra.mxu0 0.0
      %2093 = vmatprep.subr.mxu0 0.0
      %2094 = vmatpush1.msra.mxu0 %v2073
      %2095 = vmatprep.subr.mxu0 0.0
      %2096 = vmatpush1.msra.mxu0 %v939
      %2097 = vmatprep.subr.mxu0 0.0
      %2098 = vmatpush1.msra.mxu0 %v933
      %2099 = vmatprep.subr.mxu0 0.0
      %2100 = vmatpush1.msra.mxu0 %v927
      %2101 = vmatprep.subr.mxu0 0.0
      %2102 = vmatpush1.msra.mxu0 %v921
      %2103 = vmatprep.subr.mxu0 0.0
      %2104 = vmatpush1.msra.mxu0 %v915
      %2105 = vmatprep.subr.mxu0 0.0
      %2106 = vmatpush1.msra.mxu0 %v909
      %2107 = vmatprep.subr.mxu0 0.0
      %2108 = vmatpush2.msra.mxu0 0.0
      %2109 = vmatprep.subr.mxu0 0.0
      %2110 = vmatpush2.msra.mxu0 0.0
      %2111 = vmatprep.subr.mxu0 0.0
      %2112 = vmatpush2.msra.mxu0 0.0
      %2113 = vmatprep.subr.mxu0 0.0
      %2114 = vmatpush2.msra.mxu0 0.0
      %2115 = vmatprep.subr.mxu0 0.0
      %2116 = vmatpush2.msra.mxu0 0.0
      %2117 = vmatprep.subr.mxu0 0.0
      %2118 = vmatpush2.msra.mxu0 0.0
      %2119 = vmatprep.subr.mxu0 0.0
      %2120 = vmatpush2.msra.mxu0 0.0
      %2121 = vmatprep.subr.mxu0 0.0
      %2122 = vmatpush2.msra.mxu0 0.0
      %2123 = vmatprep.subr.mxu0 0.0
      %2124 = vmatpush2.msra.mxu0 0.0
      %2125 = vmatprep.subr.mxu0 0.0
      %2126 = vmatpush2.msra.mxu0 0.0
      %2127 = vmatprep.subr.mxu0 0.0
      %2128 = vmatpush2.msra.mxu0 0.0
      %2129 = vmatprep.subr.mxu0 0.0
      %2130 = vmatpush2.msra.mxu0 0.0
      %2131 = vmatprep.subr.mxu0 0.0
      %2132 = vmatpush2.msra.mxu0 0.0
      %2133 = vmatprep.subr.mxu0 0.0
      %2134 = vmatpush2.msra.mxu0 0.0
      %2135 = vmatprep.subr.mxu0 0.0
      %2136 = vmatpush2.msra.mxu0 0.0
      %2137 = vmatprep.subr.mxu0 0.0
      %2138 = vmatpush2.msra.mxu0 0.0
      %2139 = vmatprep.mubr.f32.mxu0 0.0
      %2140 = vmatmul.mubr.f32.gmra.mxu0 %v2052
      %v2141 = vpop.f32.mrf.mxu0
      %v2142 = vadd.f32 0.0, %v2141
      %v2143 = vpop.f32.mrf.mxu0
      %2144 = vmatprep.mubr.f32.mxu0 0.0
      %2145 = vmatmul.mubr.f32.gmra.mxu0 %v2055
      %v2146 = vpop.f32.mrf.mxu0
      %v2147 = vadd.f32 0.0, %v2146
      %v2148 = vpop.f32.mrf.mxu0
      %2149 = vmatprep.mubr.f32.mxu0 0.0
      %2150 = vmatmul.mubr.f32.gmra.mxu0 %v2058
      %v2151 = vpop.f32.mrf.mxu0
      %v2152 = vadd.f32 0.0, %v2151
      %v2153 = vpop.f32.mrf.mxu0
      %2154 = vmatprep.mubr.f32.mxu0 0.0
      %2155 = vmatmul.mubr.f32.gmra.mxu0 %v2061
      %v2156 = vpop.f32.mrf.mxu0
      %v2157 = vadd.f32 0.0, %v2156
      %v2158 = vpop.f32.mrf.mxu0
      %2159 = vmatprep.mubr.f32.mxu0 0.0
      %2160 = vmatmul.mubr.f32.gmra.mxu0 %v2064
      %v2161 = vpop.f32.mrf.mxu0
      %v2162 = vadd.f32 0.0, %v2161
      %v2163 = vpop.f32.mrf.mxu0
      %2164 = vmatprep.mubr.f32.mxu0 0.0
      %2165 = vmatmul.mubr.f32.gmra.mxu0 %v2067
      %v2166 = vpop.f32.mrf.mxu0
      %v2167 = vadd.f32 0.0, %v2166
      %v2168 = vpop.f32.mrf.mxu0
      %2169 = vmatprep.mubr.f32.mxu0 0.0
      %2170 = vmatmul.mubr.f32.gmra.mxu0 %v2070
      %v2171 = vpop.f32.mrf.mxu0
      %v2172 = vadd.f32 0.0, %v2171
      %v2173 = vpop.f32.mrf.mxu0
      %2174 = vdwg.mxu0
      %v2175 = vadd.f32 %v2036, %v2142
      %v2176 = vadd.f32 %v2037, %v2147
      %v2177 = vadd.f32 %v2038, %v2152
      %v2178 = vadd.f32 %v2039, %v2157
      %v2179 = vadd.f32 %v2040, %v2162
      %v2180 = vadd.f32 %v2041, %v2167
      %v2181 = vadd.f32 %v2042, %v2172
      %s2182 = scalar_lea.vmem %s2, 392
      %v2183 = vld [vmem:[%s2182] sm:$0xff]
      %v2184 = vld [vmem:[%s2182 + $0x8] sm:$0xff]
      %v2185 = vld [vmem:[%s2182 + $0x10] sm:$0xff]
      %v2186 = vld [vmem:[%s2182 + $0x18] sm:$0xff]
      %v2187 = vld [vmem:[%s2182 + $0x20] sm:$0xff]
      %v2188 = vld [vmem:[%s2182 + $0x28] sm:$0xff]
      %v2189 = vld [vmem:[%s2182 + $0x30] sm:$0x1]
      %2196 = vrot.lane.b32.xlu0 %v909, 64
      %v2197 = vpop.permute.xlu0 %2196
      %2198 = vrot.lane.b32.xlu0 %v915, 64
      %v2199 = vpop.permute.xlu0 %2198
      %2200 = vrot.lane.b32.xlu0 %v921, 64
      %v2201 = vpop.permute.xlu0 %2200
      %2202 = vrot.lane.b32.xlu0 %v927, 64
      %v2203 = vpop.permute.xlu0 %2202
      %2204 = vrot.lane.b32.xlu0 %v933, 64
      %v2205 = vpop.permute.xlu0 %2204
      %2206 = vrot.lane.b32.xlu0 %v939, 64
      %v2207 = vpop.permute.xlu0 %2206
      %2208 = vrot.lane.b32.xlu0 %v945, 64
      %v2209 = vpop.permute.xlu0 %2208
      %v2217 = vsel %vm1189, %v2183, 0
      %v2220 = vsel %vm1189, %v2184, 0
      %v2223 = vsel %vm1189, %v2185, 0
      %v2226 = vsel %vm1189, %v2186, 0
      %v2229 = vsel %vm1189, %v2187, 0
      %v2232 = vsel %vm1189, %v2188, 0
      %v2235 = vsel %vm1189, %v2189, 0
      %v2237 = vsel %vm1211, %v2209, 0
      %2239 = vmatprep.subr.mxu0 0.0
      %2240 = vmatpush1.msra.mxu0 0.0
      %2241 = vmatprep.subr.mxu0 0.0
      %2242 = vmatpush1.msra.mxu0 0.0
      %2243 = vmatprep.subr.mxu0 0.0
      %2244 = vmatpush1.msra.mxu0 0.0
      %2245 = vmatprep.subr.mxu0 0.0
      %2246 = vmatpush1.msra.mxu0 0.0
      %2247 = vmatprep.subr.mxu0 0.0
      %2248 = vmatpush1.msra.mxu0 0.0
      %2249 = vmatprep.subr.mxu0 0.0
      %2250 = vmatpush1.msra.mxu0 0.0
      %2251 = vmatprep.subr.mxu0 0.0
      %2252 = vmatpush1.msra.mxu0 0.0
      %2253 = vmatprep.subr.mxu0 0.0
      %2254 = vmatpush1.msra.mxu0 0.0
      %2255 = vmatprep.subr.mxu0 0.0
      %2256 = vmatpush1.msra.mxu0 0.0
      %2257 = vmatprep.subr.mxu0 0.0
      %2258 = vmatpush1.msra.mxu0 %v2237
      %2259 = vmatprep.subr.mxu0 0.0
      %2260 = vmatpush1.msra.mxu0 %v2207
      %2261 = vmatprep.subr.mxu0 0.0
      %2262 = vmatpush1.msra.mxu0 %v2205
      %2263 = vmatprep.subr.mxu0 0.0
      %2264 = vmatpush1.msra.mxu0 %v2203
      %2265 = vmatprep.subr.mxu0 0.0
      %2266 = vmatpush1.msra.mxu0 %v2201
      %2267 = vmatprep.subr.mxu0 0.0
      %2268 = vmatpush1.msra.mxu0 %v2199
      %2269 = vmatprep.subr.mxu0 0.0
      %2270 = vmatpush1.msra.mxu0 %v2197
      %2271 = vmatprep.subr.mxu0 0.0
      %2272 = vmatpush2.msra.mxu0 0.0
      %2273 = vmatprep.subr.mxu0 0.0
      %2274 = vmatpush2.msra.mxu0 0.0
      %2275 = vmatprep.subr.mxu0 0.0
      %2276 = vmatpush2.msra.mxu0 0.0
      %2277 = vmatprep.subr.mxu0 0.0
      %2278 = vmatpush2.msra.mxu0 0.0
      %2279 = vmatprep.subr.mxu0 0.0
      %2280 = vmatpush2.msra.mxu0 0.0
      %2281 = vmatprep.subr.mxu0 0.0
      %2282 = vmatpush2.msra.mxu0 0.0
      %2283 = vmatprep.subr.mxu0 0.0
      %2284 = vmatpush2.msra.mxu0 0.0
      %2285 = vmatprep.subr.mxu0 0.0
      %2286 = vmatpush2.msra.mxu0 0.0
      %2287 = vmatprep.subr.mxu0 0.0
      %2288 = vmatpush2.msra.mxu0 0.0
      %2289 = vmatprep.subr.mxu0 0.0
      %2290 = vmatpush2.msra.mxu0 0.0
      %2291 = vmatprep.subr.mxu0 0.0
      %2292 = vmatpush2.msra.mxu0 0.0
      %2293 = vmatprep.subr.mxu0 0.0
      %2294 = vmatpush2.msra.mxu0 0.0
      %2295 = vmatprep.subr.mxu0 0.0
      %2296 = vmatpush2.msra.mxu0 0.0
      %2297 = vmatprep.subr.mxu0 0.0
      %2298 = vmatpush2.msra.mxu0 0.0
      %2299 = vmatprep.subr.mxu0 0.0
      %2300 = vmatpush2.msra.mxu0 0.0
      %2301 = vmatprep.subr.mxu0 0.0
      %2302 = vmatpush2.msra.mxu0 0.0
      %2303 = vmatprep.mubr.f32.mxu0 0.0
      %2304 = vmatmul.mubr.f32.gmra.mxu0 %v2217
      %v2305 = vpop.f32.mrf.mxu0
      %v2306 = vadd.f32 0.0, %v2305
      %v2307 = vpop.f32.mrf.mxu0
      %2308 = vmatprep.mubr.f32.mxu0 0.0
      %2309 = vmatmul.mubr.f32.gmra.mxu0 %v2220
      %v2310 = vpop.f32.mrf.mxu0
      %v2311 = vadd.f32 0.0, %v2310
      %v2312 = vpop.f32.mrf.mxu0
      %2313 = vmatprep.mubr.f32.mxu0 0.0
      %2314 = vmatmul.mubr.f32.gmra.mxu0 %v2223
      %v2315 = vpop.f32.mrf.mxu0
      %v2316 = vadd.f32 0.0, %v2315
      %v2317 = vpop.f32.mrf.mxu0
      %2318 = vmatprep.mubr.f32.mxu0 0.0
      %2319 = vmatmul.mubr.f32.gmra.mxu0 %v2226
      %v2320 = vpop.f32.mrf.mxu0
      %v2321 = vadd.f32 0.0, %v2320
      %v2322 = vpop.f32.mrf.mxu0
      %2323 = vmatprep.mubr.f32.mxu0 0.0
      %2324 = vmatmul.mubr.f32.gmra.mxu0 %v2229
      %v2325 = vpop.f32.mrf.mxu0
      %v2326 = vadd.f32 0.0, %v2325
      %v2327 = vpop.f32.mrf.mxu0
      %2328 = vmatprep.mubr.f32.mxu0 0.0
      %2329 = vmatmul.mubr.f32.gmra.mxu0 %v2232
      %v2330 = vpop.f32.mrf.mxu0
      %v2331 = vadd.f32 0.0, %v2330
      %v2332 = vpop.f32.mrf.mxu0
      %2333 = vmatprep.mubr.f32.mxu0 0.0
      %2334 = vmatmul.mubr.f32.gmra.mxu0 %v2235
      %v2335 = vpop.f32.mrf.mxu0
      %v2336 = vadd.f32 0.0, %v2335
      %v2337 = vpop.f32.mrf.mxu0
      %2338 = vdwg.mxu0
      %v2339 = vadd.f32 %v2175, %v2306
      %v2340 = vadd.f32 %v2176, %v2311
      %v2341 = vadd.f32 %v2177, %v2316
      %v2342 = vadd.f32 %v2178, %v2321
      %v2343 = vadd.f32 %v2179, %v2326
      %v2344 = vadd.f32 %v2180, %v2331
      %v2345 = vadd.f32 %v2181, %v2336
      %s2346 = scalar_lea.vmem %s2, 448
      %v2347 = vld [vmem:[%s2346] sm:$0xff]
      %v2348 = vld [vmem:[%s2346 + $0x8] sm:$0xff]
      %v2349 = vld [vmem:[%s2346 + $0x10] sm:$0xff]
      %v2350 = vld [vmem:[%s2346 + $0x18] sm:$0xff]
      %v2351 = vld [vmem:[%s2346 + $0x20] sm:$0xff]
      %v2352 = vld [vmem:[%s2346 + $0x28] sm:$0xff]
      %v2353 = vld [vmem:[%s2346 + $0x30] sm:$0x1]
      %v2355 = vsel %vm1189, %v2347, 0
      %v2358 = vsel %vm1189, %v2348, 0
      %v2361 = vsel %vm1189, %v2349, 0
      %v2364 = vsel %vm1189, %v2350, 0
      %v2367 = vsel %vm1189, %v2351, 0
      %v2370 = vsel %vm1189, %v2352, 0
      %v2373 = vsel %vm1189, %v2353, 0
      %v2376 = vsel %vm1211, %v1144, 0
      %2378 = vmatprep.subr.mxu0 0.0
      %2379 = vmatpush1.msra.mxu0 0.0
      %2380 = vmatprep.subr.mxu0 0.0
      %2381 = vmatpush1.msra.mxu0 0.0
      %2382 = vmatprep.subr.mxu0 0.0
      %2383 = vmatpush1.msra.mxu0 0.0
      %2384 = vmatprep.subr.mxu0 0.0
      %2385 = vmatpush1.msra.mxu0 0.0
      %2386 = vmatprep.subr.mxu0 0.0
      %2387 = vmatpush1.msra.mxu0 0.0
      %2388 = vmatprep.subr.mxu0 0.0
      %2389 = vmatpush1.msra.mxu0 0.0
      %2390 = vmatprep.subr.mxu0 0.0
      %2391 = vmatpush1.msra.mxu0 0.0
      %2392 = vmatprep.subr.mxu0 0.0
      %2393 = vmatpush1.msra.mxu0 0.0
      %2394 = vmatprep.subr.mxu0 0.0
      %2395 = vmatpush1.msra.mxu0 0.0
      %2396 = vmatprep.subr.mxu0 0.0
      %2397 = vmatpush1.msra.mxu0 %v2376
      %2398 = vmatprep.subr.mxu0 0.0
      %2399 = vmatpush1.msra.mxu0 %v1139
      %2400 = vmatprep.subr.mxu0 0.0
      %2401 = vmatpush1.msra.mxu0 %v1134
      %2402 = vmatprep.subr.mxu0 0.0
      %2403 = vmatpush1.msra.mxu0 %v1129
      %2404 = vmatprep.subr.mxu0 0.0
      %2405 = vmatpush1.msra.mxu0 %v1124
      %2406 = vmatprep.subr.mxu0 0.0
      %2407 = vmatpush1.msra.mxu0 %v1119
      %2408 = vmatprep.subr.mxu0 0.0
      %2409 = vmatpush1.msra.mxu0 %v1114
      %2410 = vmatprep.subr.mxu0 0.0
      %2411 = vmatpush2.msra.mxu0 0.0
      %2412 = vmatprep.subr.mxu0 0.0
      %2413 = vmatpush2.msra.mxu0 0.0
      %2414 = vmatprep.subr.mxu0 0.0
      %2415 = vmatpush2.msra.mxu0 0.0
      %2416 = vmatprep.subr.mxu0 0.0
      %2417 = vmatpush2.msra.mxu0 0.0
      %2418 = vmatprep.subr.mxu0 0.0
      %2419 = vmatpush2.msra.mxu0 0.0
      %2420 = vmatprep.subr.mxu0 0.0
      %2421 = vmatpush2.msra.mxu0 0.0
      %2422 = vmatprep.subr.mxu0 0.0
      %2423 = vmatpush2.msra.mxu0 0.0
      %2424 = vmatprep.subr.mxu0 0.0
      %2425 = vmatpush2.msra.mxu0 0.0
      %2426 = vmatprep.subr.mxu0 0.0
      %2427 = vmatpush2.msra.mxu0 0.0
      %2428 = vmatprep.subr.mxu0 0.0
      %2429 = vmatpush2.msra.mxu0 0.0
      %2430 = vmatprep.subr.mxu0 0.0
      %2431 = vmatpush2.msra.mxu0 0.0
      %2432 = vmatprep.subr.mxu0 0.0
      %2433 = vmatpush2.msra.mxu0 0.0
      %2434 = vmatprep.subr.mxu0 0.0
      %2435 = vmatpush2.msra.mxu0 0.0
      %2436 = vmatprep.subr.mxu0 0.0
      %2437 = vmatpush2.msra.mxu0 0.0
      %2438 = vmatprep.subr.mxu0 0.0
      %2439 = vmatpush2.msra.mxu0 0.0
      %2440 = vmatprep.subr.mxu0 0.0
      %2441 = vmatpush2.msra.mxu0 0.0
      %2442 = vmatprep.mubr.f32.mxu0 0.0
      %2443 = vmatmul.mubr.f32.gmra.mxu0 %v2355
      %v2444 = vpop.f32.mrf.mxu0
      %v2445 = vadd.f32 0.0, %v2444
      %v2446 = vpop.f32.mrf.mxu0
      %2447 = vmatprep.mubr.f32.mxu0 0.0
      %2448 = vmatmul.mubr.f32.gmra.mxu0 %v2358
      %v2449 = vpop.f32.mrf.mxu0
      %v2450 = vadd.f32 0.0, %v2449
      %v2451 = vpop.f32.mrf.mxu0
      %2452 = vmatprep.mubr.f32.mxu0 0.0
      %2453 = vmatmul.mubr.f32.gmra.mxu0 %v2361
      %v2454 = vpop.f32.mrf.mxu0
      %v2455 = vadd.f32 0.0, %v2454
      %v2456 = vpop.f32.mrf.mxu0
      %2457 = vmatprep.mubr.f32.mxu0 0.0
      %2458 = vmatmul.mubr.f32.gmra.mxu0 %v2364
      %v2459 = vpop.f32.mrf.mxu0
      %v2460 = vadd.f32 0.0, %v2459
      %v2461 = vpop.f32.mrf.mxu0
      %2462 = vmatprep.mubr.f32.mxu0 0.0
      %2463 = vmatmul.mubr.f32.gmra.mxu0 %v2367
      %v2464 = vpop.f32.mrf.mxu0
      %v2465 = vadd.f32 0.0, %v2464
      %v2466 = vpop.f32.mrf.mxu0
      %2467 = vmatprep.mubr.f32.mxu0 0.0
      %2468 = vmatmul.mubr.f32.gmra.mxu0 %v2370
      %v2469 = vpop.f32.mrf.mxu0
      %v2470 = vadd.f32 0.0, %v2469
      %v2471 = vpop.f32.mrf.mxu0
      %2472 = vmatprep.mubr.f32.mxu0 0.0
      %2473 = vmatmul.mubr.f32.gmra.mxu0 %v2373
      %v2474 = vpop.f32.mrf.mxu0
      %v2475 = vadd.f32 0.0, %v2474
      %v2476 = vpop.f32.mrf.mxu0
      %2477 = vdwg.mxu0
      %v2478 = vadd.f32 %v2339, %v2445
      %v2479 = vadd.f32 %v2340, %v2450
      %v2480 = vadd.f32 %v2341, %v2455
      %v2481 = vadd.f32 %v2342, %v2460
      %v2482 = vadd.f32 %v2343, %v2465
      %v2483 = vadd.f32 %v2344, %v2470
      %v2484 = vadd.f32 %v2345, %v2475
      %vm2485 = vcmask 523264
      %2486 = vst.msk [vmem:[%s170] sm:$0xff] %vm2485, %v2478
      %2487 = vst.msk [vmem:[%s170 + $0x8] sm:$0xff] %vm2485, %v2479
      %2488 = vst.msk [vmem:[%s170 + $0x10] sm:$0xff] %vm2485, %v2480
      %2489 = vst.msk [vmem:[%s170 + $0x18] sm:$0xff] %vm2485, %v2481
      %2490 = vst.msk [vmem:[%s170 + $0x20] sm:$0xff] %vm2485, %v2482
      %2491 = vst.msk [vmem:[%s170 + $0x28] sm:$0xff] %vm2485, %v2483
      %vm2492 = vcmask 516096
      %2493 = vst.msk [vmem:[%s170 + $0x30] sm:$0x1] %vm2492, %v2484
      %p2494 = scmp.lt.s32.totalorder %s14, 1
      %s2495 = scalar_select %p2494, %s14, 1
      %s2496 = smul.addr %s2495, 7
      %s2497 = smul.addr %s2496, 8
      %s2498 = scalar_lea.vmem %s3, %s2497
      // Predicated region
      $region33: #{tpu_custom_call.1} parent=31 // pred_check
        %p2499 = pneg %p100
      $region34: #{tpu_custom_call.1} parent=31 // pred_check_branch
        %2501 = sbr.rel (%p2499) target = $region36
      $region35: #{tpu_custom_call.1} parent=31 // pred_region
        _
      $region36: #{tpu_custom_call.1} parent=31 // pred_fallthru
        _
    $region32: #{tpu_custom_call.1} parent=5 // pred_fallthru
      _
    %p2502 = scmp.le.s32.totalorder 2, %s9
    // Predicated region
    $region37: #{tpu_custom_call.1} parent=5 // pred_check
      %p2503 = pneg %p2502
    $region38: #{tpu_custom_call.1} parent=5 // pred_check_branch
      %2505 = sbr.rel (%p2503) target = $region40
    $region39: #{tpu_custom_call.1} parent=5 // pred_region
      %s2506 = ssub.s32 %s9, 2
      // Predicated region
      $region41: #{tpu_custom_call.1} parent=39 // pred_check
        %p2507 = pneg %p106
      $region42: #{tpu_custom_call.1} parent=39 // pred_check_branch
        %2509 = sbr.rel (%p2507) target = $region44
      $region43: #{tpu_custom_call.1} parent=39 // pred_region
        %p2510 = scmp.lt.s32.totalorder %s15, 1
        %s2511 = scalar_select %p2510, %s15, 1
        %s2512 = smul.addr %s2511, 7
        %s2513 = smul.addr %s2512, 8
        %s2514 = scalar_lea.vmem %s3, %s2513
      $region44: #{tpu_custom_call.1} parent=39 // pred_fallthru
        _
    $region40: #{tpu_custom_call.1} parent=5 // pred_fallthru
      _
  $region6: #{tpu_custom_call.1} parent=0 // loop_footer
    %s13 = sadd.s32 1, %s9
  $region7: #{tpu_custom_call.1} parent=0 // loop_footer_branch
    %8 = sbr.rel target = $region3
  $region8: #{tpu_custom_call.1} parent=0 // loop_exit
    _

</llo_original>
